<compile_context>
chip_gen: v7x
topology: tpu7x:2x2x1
jax: 0.10.0
libtpu: 0.0.40
codegen_flags: <defaults>
</compile_context>

<pallas_src>
import jax
import jax.numpy as jnp
from jax.experimental import pallas as pl
from jax.experimental.pallas import tpu as pltpu

SQRT_HALF = 0.7071067811865476


# ---------------------------------------------------------------------------
# Fused kernel: one grid step == one stream (0: near, 1: far).
# ---------------------------------------------------------------------------
def _fused_noma_kernel(xn_ref, xf_ref, csi_ref, noise_ref,
                       sw1_ref, sb1_ref, sw2_ref, sb2_ref,
                       dw1_ref, db1_ref, dw2_ref, db2_ref,
                       s_ref, xhat_ref):
    xn = xn_ref[...]
    xf = xf_ref[...]

    # power_norm(type='real', keep_shape=True): per-sample unit average power.
    pn = jnp.mean(xn * xn, axis=-1, keepdims=True)
    pf = jnp.mean(xf * xf, axis=-1, keepdims=True)
    xn_norm = xn * jax.lax.rsqrt(pn + 1e-12)
    xf_norm = xf * jax.lax.rsqrt(pf + 1e-12)

    # equal-power superposition coding.
    sc = SQRT_HALF * xn_norm + SQRT_HALF * xf_norm

    # channel for this stream: y = h * x + awgn  (per-sample csi gain).
    # TODO(synk): csi could live in SMEM via scalar prefetch; at B=2 the
    # (B, 1) VMEM block is negligible.
    y = csi_ref[...] * sc + noise_ref[...]

    # symbol-detection net (ReLU hidden, linear out). bf16 weights, f32 acc.
    h = jnp.dot(y.astype(jnp.bfloat16), sw1_ref[...],
                preferred_element_type=jnp.float32) + sb1_ref[...]
    h = jnp.maximum(h, 0.0)
    x_hat = jnp.dot(h.astype(jnp.bfloat16), sw2_ref[...],
                    preferred_element_type=jnp.float32) + sb2_ref[...]
    xhat_ref[...] = x_hat

    # decoder (ReLU hidden, sigmoid out), consuming x_hat directly from vregs.
    h2 = jnp.dot(x_hat.astype(jnp.bfloat16), dw1_ref[...],
                 preferred_element_type=jnp.float32) + db1_ref[...]
    h2 = jnp.maximum(h2, 0.0)
    logits = jnp.dot(h2.astype(jnp.bfloat16), dw2_ref[...],
                     preferred_element_type=jnp.float32) + db2_ref[...]
    s_ref[...] = jax.nn.sigmoid(logits)


def fused_noma_forward(x_n_flat, x_f_flat, csi, noise,
                       sd_w1, sd_b1, sd_w2, sd_b2,
                       de_w1, de_b1, de_w2, de_b2):
    B, D = x_n_flat.shape
    H = sd_w1.shape[-1]
    S = de_w2.shape[-1]

    # Shared blocks (same tile on every grid step).
    shared = lambda shape: pl.BlockSpec(shape, lambda s: (0, 0))
    # Per-stream blocks: leading stream dim is squeezed out inside the kernel.
    per_stream = lambda shape: pl.BlockSpec((None,) + shape,
                                            lambda s: (s, 0, 0))

    return pl.pallas_call(
        _fused_noma_kernel,
        out_shape=[jax.ShapeDtypeStruct((2, B, S), jnp.float32),
                   jax.ShapeDtypeStruct((2, B, D), jnp.float32)],
        grid=(2,),
        in_specs=[shared((B, D)), shared((B, D)),
                  per_stream((B, 1)), per_stream((B, D)),
                  per_stream((D, H)), per_stream((1, H)),
                  per_stream((H, D)), per_stream((1, D)),
                  per_stream((D, H)), per_stream((1, H)),
                  per_stream((H, S)), per_stream((1, S))],
        out_specs=[per_stream((B, S)), per_stream((B, D))],
        compiler_params=pltpu.CompilerParams(
            dimension_semantics=("parallel",)),   # v7x: one stream per TC
    )(x_n_flat, x_f_flat, csi, noise,
      sd_w1, sd_b1, sd_w2, sd_b2,
      de_w1, de_b1, de_w2, de_b2)


# ---------------------------------------------------------------------------
# Module wrapper
# ---------------------------------------------------------------------------
def make_mlp_params(key, d_in, hidden, d_out):
    k1, k2 = jax.random.split(key)
    w1 = jax.random.normal(k1, (d_in, hidden), jnp.float32) / jnp.sqrt(d_in)
    b1 = jnp.zeros((1, hidden), jnp.float32)
    w2 = jax.random.normal(k2, (hidden, d_out), jnp.float32) / jnp.sqrt(hidden)
    b2 = jnp.zeros((1, d_out), jnp.float32)
    return (w1, b1, w2, b2)


def _stack_stream_params(p_n, p_f):
    """Stack [near, far] along a new leading stream axis.

    Weights -> bf16 (halves HBM weight traffic; f32 MXU accumulation in-kernel),
    biases stay f32.
    """
    w1 = jnp.stack([p_n[0], p_f[0]]).astype(jnp.bfloat16)
    b1 = jnp.stack([p_n[1], p_f[1]])
    w2 = jnp.stack([p_n[2], p_f[2]]).astype(jnp.bfloat16)
    b2 = jnp.stack([p_n[3], p_f[3]])
    return w1, b1, w2, b2


def eq_pow_sccoding_no_sic_forward(x_n, x_f, csi_n, csi_f, params, noise_key,
                                   snr_db=10.0):
    """x_n, x_f: NCHW [B, C, H, W]; csi_n, csi_f: [B, 1] fading gains."""
    B = x_n.shape[0]
    x_n_flat = x_n.reshape(B, -1).astype(jnp.float32)
    x_f_flat = x_f.reshape(B, -1).astype(jnp.float32)
    D = x_n_flat.shape[1]

    # Pre-generated AWGN for the two channel realizations (near, far).
    # TODO(synk): could be generated in-kernel with pltpu.prng_* to drop the
    # extra (2, B, D) HBM read; negligible at this size.
    noise_std = jnp.sqrt(10.0 ** (-snr_db / 10.0)).astype(jnp.float32)
    noise = noise_std * jax.random.normal(noise_key, (2, B, D), jnp.float32)
    csi = jnp.stack([csi_n.astype(jnp.float32), csi_f.astype(jnp.float32)])

    sd_w1, sd_b1, sd_w2, sd_b2 = _stack_stream_params(params["sd_net_n"],
                                                      params["sd_net_f"])
    de_w1, de_b1, de_w2, de_b2 = _stack_stream_params(params["decoder_n"],
                                                      params["decoder_f"])

    s_hat, x_hat = fused_noma_forward(x_n_flat, x_f_flat, csi, noise,
                                      sd_w1, sd_b1, sd_w2, sd_b2,
                                      de_w1, de_b1, de_w2, de_b2)

    s_n_hat, s_f_hat = s_hat[0], s_hat[1]
    x_n_hat, x_f_hat = x_hat[0], x_hat[1]

    # TODO(synk): the original `channel` module's exact `channel_use` return is
    # unavailable; report complex channel uses per sample (D real symbols / 2).
    channel_use_n = jnp.float32(D / 2.0)
    channel_use_f = jnp.float32(D / 2.0)

    return (s_n_hat, s_f_hat, x_f_hat, x_n_hat, channel_use_n, channel_use_f)


# ---------------------------------------------------------------------------
# Pure-JAX reference (same bf16-cast weights) for a correctness self-check.
# ---------------------------------------------------------------------------
def _reference_forward(x_n_flat, x_f_flat, csi, noise,
                       sd_w1, sd_b1, sd_w2, sd_b2,
                       de_w1, de_b1, de_w2, de_b2):
    def pnorm(x):
        return x * jax.lax.rsqrt(jnp.mean(x * x, -1, keepdims=True) + 1e-12)

    sc = SQRT_HALF * pnorm(x_n_flat) + SQRT_HALF * pnorm(x_f_flat)
    s_out, x_out = [], []
    for s in range(2):
        y = csi[s] * sc + noise[s]
        h = jnp.maximum(
            jnp.dot(y.astype(jnp.bfloat16), sd_w1[s],
                    preferred_element_type=jnp.float32) + sd_b1[s], 0.0)
        x_hat = jnp.dot(h.astype(jnp.bfloat16), sd_w2[s],
                        preferred_element_type=jnp.float32) + sd_b2[s]
        h2 = jnp.maximum(
            jnp.dot(x_hat.astype(jnp.bfloat16), de_w1[s],
                    preferred_element_type=jnp.float32) + de_b1[s], 0.0)
        logits = jnp.dot(h2.astype(jnp.bfloat16), de_w2[s],
                         preferred_element_type=jnp.float32) + de_b2[s]
        s_out.append(jax.nn.sigmoid(logits))
        x_out.append(x_hat)
    return jnp.stack(s_out), jnp.stack(x_out)


if __name__ == "__main__":
    # Small shapes consistent with the module's NCHW convention.
    B, C, Hs, Ws = 2, 4, 8, 8           # D = 256
    D = C * Hs * Ws
    HIDDEN = 128
    S_DIM = 256                          # decoded source feature dim

    root = jax.random.PRNGKey(0)
    (k_xn, k_xf, k_csin, k_csif, k_noise,
     k_p1, k_p2, k_p3, k_p4) = jax.random.split(root, 9)

    x_n = jax.random.normal(k_xn, (B, C, Hs, Ws), jnp.float32)
    x_f = jax.random.normal(k_xf, (B, C, Hs, Ws), jnp.float32)
    # per-sample fading gains (positive)
    csi_n = jnp.abs(jax.random.normal(k_csin, (B, 1), jnp.float32)) + 0.5
    csi_f = jnp.abs(jax.random.normal(k_csif, (B, 1), jnp.float32)) + 0.5

    params = {
        "sd_net_n": make_mlp_params(k_p1, D, HIDDEN, D),
        "sd_net_f": make_mlp_params(k_p2, D, HIDDEN, D),
        "decoder_n": make_mlp_params(k_p3, D, HIDDEN, S_DIM),
        "decoder_f": make_mlp_params(k_p4, D, HIDDEN, S_DIM),
    }

    outs = eq_pow_sccoding_no_sic_forward(x_n, x_f, csi_n, csi_f,
                                          params, k_noise, snr_db=10.0)
    outs = jax.block_until_ready(outs)
    s_n_hat, s_f_hat, x_f_hat, x_n_hat, cu_n, cu_f = outs

    assert s_n_hat.shape == (B, S_DIM) and s_f_hat.shape == (B, S_DIM)
    assert x_n_hat.shape == (B, D) and x_f_hat.shape == (B, D)

    # Correctness self-check against a pure-JAX reference using the same
    # bf16-cast weights and the same noise realization.
    x_n_flat = x_n.reshape(B, -1)
    x_f_flat = x_f.reshape(B, -1)
    noise_std = jnp.sqrt(10.0 ** (-10.0 / 10.0)).astype(jnp.float32)
    noise = noise_std * jax.random.normal(k_noise, (2, B, D), jnp.float32)
    csi = jnp.stack([csi_n, csi_f])
    sdp = _stack_stream_params(params["sd_net_n"], params["sd_net_f"])
    dep = _stack_stream_params(params["decoder_n"], params["decoder_f"])
    s_ref, x_ref = _reference_forward(x_n_flat, x_f_flat, csi, noise,
                                      *sdp, *dep)
    s_ref, x_ref = jax.block_until_ready((s_ref, x_ref))

    assert bool(jnp.allclose(s_n_hat, s_ref[0], atol=1e-2, rtol=1e-2))
    assert bool(jnp.allclose(s_f_hat, s_ref[1], atol=1e-2, rtol=1e-2))
    assert bool(jnp.allclose(x_n_hat, x_ref[0], atol=1e-2, rtol=1e-2))
    assert bool(jnp.allclose(x_f_hat, x_ref[1], atol=1e-2, rtol=1e-2))

    print("KERNEL_OK")
</pallas_src>

<mosaic_0001>
module attributes {stable_mosaic.version = 11 : i64} {
  func.func @_fused_noma_kernel(%arg0: i32, %arg1: memref<2x256xf32, #tpu.memory_space<vmem>>, %arg2: memref<2x256xf32, #tpu.memory_space<vmem>>, %arg3: memref<1x2x1xf32, #tpu.memory_space<vmem>>, %arg4: memref<1x2x256xf32, #tpu.memory_space<vmem>>, %arg5: memref<1x256x128xbf16, #tpu.memory_space<vmem>>, %arg6: memref<1x1x128xf32, #tpu.memory_space<vmem>>, %arg7: memref<1x128x256xbf16, #tpu.memory_space<vmem>>, %arg8: memref<1x1x256xf32, #tpu.memory_space<vmem>>, %arg9: memref<1x256x128xbf16, #tpu.memory_space<vmem>>, %arg10: memref<1x1x128xf32, #tpu.memory_space<vmem>>, %arg11: memref<1x128x256xbf16, #tpu.memory_space<vmem>>, %arg12: memref<1x1x256xf32, #tpu.memory_space<vmem>>, %arg13: memref<1x2x256xf32, #tpu.memory_space<vmem>>, %arg14: memref<1x2x256xf32, #tpu.memory_space<vmem>>) attributes {dimension_semantics = [#tpu.dimension_semantics<parallel>], iteration_bounds = array<i64: 2>, scalar_prefetch = 0 : i64, scratch_operands = 0 : i64, tpu.core_type = #tpu.core_type<tc>, window_params = [{pipeline_mode = #tpu.pipeline_mode<synchronous>, transform_indices = @transform_0, window_bounds = array<i64: 2, 256>}, {pipeline_mode = #tpu.pipeline_mode<synchronous>, transform_indices = @transform_1, window_bounds = array<i64: 2, 256>}, {transform_indices = @transform_2, window_bounds = array<i64: 1, 2, 1>}, {transform_indices = @transform_3, window_bounds = array<i64: 1, 2, 256>}, {transform_indices = @transform_4, window_bounds = array<i64: 1, 256, 128>}, {transform_indices = @transform_5, window_bounds = array<i64: 1, 1, 128>}, {transform_indices = @transform_6, window_bounds = array<i64: 1, 128, 256>}, {transform_indices = @transform_7, window_bounds = array<i64: 1, 1, 256>}, {transform_indices = @transform_8, window_bounds = array<i64: 1, 256, 128>}, {transform_indices = @transform_9, window_bounds = array<i64: 1, 1, 128>}, {transform_indices = @transform_10, window_bounds = array<i64: 1, 128, 256>}, {transform_indices = @transform_11, window_bounds = array<i64: 1, 1, 256>}, {transform_indices = @transform_12, window_bounds = array<i64: 1, 2, 256>}, {transform_indices = @transform_13, window_bounds = array<i64: 1, 2, 256>}]} {
    %c0 = arith.constant 0 : index
    %c0_0 = arith.constant 0 : index
    %0 = vector.load %arg1[%c0, %c0_0] : memref<2x256xf32, #tpu.memory_space<vmem>>, vector<2x256xf32>
    %c0_1 = arith.constant 0 : index
    %c0_2 = arith.constant 0 : index
    %1 = vector.load %arg2[%c0_1, %c0_2] : memref<2x256xf32, #tpu.memory_space<vmem>>, vector<2x256xf32>
    %2 = arith.mulf %0, %0 : vector<2x256xf32>
    %cst = arith.constant dense<0.000000e+00> : vector<2xf32>
    %3 = vector.multi_reduction <add>, %2, %cst [1] : vector<2x256xf32> to vector<2xf32>
    %4 = vector.shape_cast %3 : vector<2xf32> to vector<2x1xf32>
    %cst_3 = arith.constant 2.560000e+02 : f32
    %5 = vector.broadcast %cst_3 : f32 to vector<2x1xf32>
    %6 = arith.divf %4, %5 : vector<2x1xf32>
    %7 = arith.mulf %1, %1 : vector<2x256xf32>
    %cst_4 = arith.constant dense<0.000000e+00> : vector<2xf32>
    %8 = vector.multi_reduction <add>, %7, %cst_4 [1] : vector<2x256xf32> to vector<2xf32>
    %9 = vector.shape_cast %8 : vector<2xf32> to vector<2x1xf32>
    %cst_5 = arith.constant 2.560000e+02 : f32
    %10 = vector.broadcast %cst_5 : f32 to vector<2x1xf32>
    %11 = arith.divf %9, %10 : vector<2x1xf32>
    %cst_6 = arith.constant 9.99999996E-13 : f32
    %12 = vector.broadcast %cst_6 : f32 to vector<2x1xf32>
    %13 = arith.addf %6, %12 : vector<2x1xf32>
    %14 = math.rsqrt %13 : vector<2x1xf32>
    %15 = vector.broadcast %14 : vector<2x1xf32> to vector<2x256xf32>
    %16 = arith.mulf %0, %15 : vector<2x256xf32>
    %cst_7 = arith.constant 9.99999996E-13 : f32
    %17 = vector.broadcast %cst_7 : f32 to vector<2x1xf32>
    %18 = arith.addf %11, %17 : vector<2x1xf32>
    %19 = math.rsqrt %18 : vector<2x1xf32>
    %20 = vector.broadcast %19 : vector<2x1xf32> to vector<2x256xf32>
    %21 = arith.mulf %1, %20 : vector<2x256xf32>
    %cst_8 = arith.constant 0.707106769 : f32
    %22 = vector.broadcast %cst_8 : f32 to vector<2x256xf32>
    %23 = arith.mulf %22, %16 : vector<2x256xf32>
    %cst_9 = arith.constant 0.707106769 : f32
    %24 = vector.broadcast %cst_9 : f32 to vector<2x256xf32>
    %25 = arith.mulf %24, %21 : vector<2x256xf32>
    %26 = arith.addf %23, %25 : vector<2x256xf32>
    %c0_10 = arith.constant 0 : index
    %c0_11 = arith.constant 0 : index
    %c0_12 = arith.constant 0 : index
    %27 = vector.load %arg3[%c0_10, %c0_11, %c0_12] : memref<1x2x1xf32, #tpu.memory_space<vmem>>, vector<1x2x1xf32>
    %28 = vector.shape_cast %27 : vector<1x2x1xf32> to vector<2x1xf32>
    %29 = vector.broadcast %28 : vector<2x1xf32> to vector<2x256xf32>
    %30 = arith.mulf %29, %26 : vector<2x256xf32>
    %c0_13 = arith.constant 0 : index
    %c0_14 = arith.constant 0 : index
    %c0_15 = arith.constant 0 : index
    %31 = vector.load %arg4[%c0_13, %c0_14, %c0_15] : memref<1x2x256xf32, #tpu.memory_space<vmem>>, vector<1x2x256xf32>
    %32 = vector.shape_cast %31 : vector<1x2x256xf32> to vector<2x256xf32>
    %33 = arith.addf %30, %32 : vector<2x256xf32>
    %34 = arith.truncf %33 : vector<2x256xf32> to vector<2x256xbf16>
    %c0_16 = arith.constant 0 : index
    %c0_17 = arith.constant 0 : index
    %c0_18 = arith.constant 0 : index
    %35 = vector.load %arg5[%c0_16, %c0_17, %c0_18] : memref<1x256x128xbf16, #tpu.memory_space<vmem>>, vector<1x256x128xbf16>
    %36 = vector.shape_cast %35 : vector<1x256x128xbf16> to vector<256x128xbf16>
    %cst_19 = arith.constant dense<0.000000e+00> : vector<2x128xf32>
    %37 = tpu.matmul %34, %36, %cst_19 {dimension_numbers = #tpu.dot_dimension_numbers<[1], [0], [0], [1], [0, 0, 1, 1], [], []>} : vector<2x256xbf16>, vector<256x128xbf16>, vector<2x128xf32> -> vector<2x128xf32>
    %c0_20 = arith.constant 0 : index
    %c0_21 = arith.constant 0 : index
    %c0_22 = arith.constant 0 : index
    %38 = vector.load %arg6[%c0_20, %c0_21, %c0_22] : memref<1x1x128xf32, #tpu.memory_space<vmem>>, vector<1x1x128xf32>
    %39 = vector.shape_cast %38 : vector<1x1x128xf32> to vector<1x128xf32>
    %40 = vector.broadcast %39 : vector<1x128xf32> to vector<2x128xf32>
    %41 = arith.addf %37, %40 : vector<2x128xf32>
    %cst_23 = arith.constant 0.000000e+00 : f32
    %42 = vector.broadcast %cst_23 : f32 to vector<2x128xf32>
    %43 = arith.maximumf %41, %42 : vector<2x128xf32>
    %44 = arith.truncf %43 : vector<2x128xf32> to vector<2x128xbf16>
    %c0_24 = arith.constant 0 : index
    %c0_25 = arith.constant 0 : index
    %c0_26 = arith.constant 0 : index
    %45 = vector.load %arg7[%c0_24, %c0_25, %c0_26] : memref<1x128x256xbf16, #tpu.memory_space<vmem>>, vector<1x128x256xbf16>
    %46 = vector.shape_cast %45 : vector<1x128x256xbf16> to vector<128x256xbf16>
    %cst_27 = arith.constant dense<0.000000e+00> : vector<2x256xf32>
    %47 = tpu.matmul %44, %46, %cst_27 {dimension_numbers = #tpu.dot_dimension_numbers<[1], [0], [0], [1], [0, 0, 1, 1], [], []>} : vector<2x128xbf16>, vector<128x256xbf16>, vector<2x256xf32> -> vector<2x256xf32>
    %c0_28 = arith.constant 0 : index
    %c0_29 = arith.constant 0 : index
    %c0_30 = arith.constant 0 : index
    %48 = vector.load %arg8[%c0_28, %c0_29, %c0_30] : memref<1x1x256xf32, #tpu.memory_space<vmem>>, vector<1x1x256xf32>
    %49 = vector.shape_cast %48 : vector<1x1x256xf32> to vector<1x256xf32>
    %50 = vector.broadcast %49 : vector<1x256xf32> to vector<2x256xf32>
    %51 = arith.addf %47, %50 : vector<2x256xf32>
    %c0_31 = arith.constant 0 : index
    %c0_32 = arith.constant 0 : index
    %c0_33 = arith.constant 0 : index
    %52 = vector.load %arg14[%c0_31, %c0_32, %c0_33] : memref<1x2x256xf32, #tpu.memory_space<vmem>>, vector<1x2x256xf32>
    %53 = vector.shape_cast %52 : vector<1x2x256xf32> to vector<2x256xf32>
    %54 = vector.shape_cast %51 : vector<2x256xf32> to vector<1x2x256xf32>
    tpu.vector_store %arg14[%c0_31, %c0_32, %c0_33], %54 {strides = array<i32>} : memref<1x2x256xf32, #tpu.memory_space<vmem>>, vector<1x2x256xf32>,
    %55 = arith.truncf %51 : vector<2x256xf32> to vector<2x256xbf16>
    %c0_34 = arith.constant 0 : index
    %c0_35 = arith.constant 0 : index
    %c0_36 = arith.constant 0 : index
    %56 = vector.load %arg9[%c0_34, %c0_35, %c0_36] : memref<1x256x128xbf16, #tpu.memory_space<vmem>>, vector<1x256x128xbf16>
    %57 = vector.shape_cast %56 : vector<1x256x128xbf16> to vector<256x128xbf16>
    %cst_37 = arith.constant dense<0.000000e+00> : vector<2x128xf32>
    %58 = tpu.matmul %55, %57, %cst_37 {dimension_numbers = #tpu.dot_dimension_numbers<[1], [0], [0], [1], [0, 0, 1, 1], [], []>} : vector<2x256xbf16>, vector<256x128xbf16>, vector<2x128xf32> -> vector<2x128xf32>
    %c0_38 = arith.constant 0 : index
    %c0_39 = arith.constant 0 : index
    %c0_40 = arith.constant 0 : index
    %59 = vector.load %arg10[%c0_38, %c0_39, %c0_40] : memref<1x1x128xf32, #tpu.memory_space<vmem>>, vector<1x1x128xf32>
    %60 = vector.shape_cast %59 : vector<1x1x128xf32> to vector<1x128xf32>
    %61 = vector.broadcast %60 : vector<1x128xf32> to vector<2x128xf32>
    %62 = arith.addf %58, %61 : vector<2x128xf32>
    %cst_41 = arith.constant 0.000000e+00 : f32
    %63 = vector.broadcast %cst_41 : f32 to vector<2x128xf32>
    %64 = arith.maximumf %62, %63 : vector<2x128xf32>
    %65 = arith.truncf %64 : vector<2x128xf32> to vector<2x128xbf16>
    %c0_42 = arith.constant 0 : index
    %c0_43 = arith.constant 0 : index
    %c0_44 = arith.constant 0 : index
    %66 = vector.load %arg11[%c0_42, %c0_43, %c0_44] : memref<1x128x256xbf16, #tpu.memory_space<vmem>>, vector<1x128x256xbf16>
    %67 = vector.shape_cast %66 : vector<1x128x256xbf16> to vector<128x256xbf16>
    %cst_45 = arith.constant dense<0.000000e+00> : vector<2x256xf32>
    %68 = tpu.matmul %65, %67, %cst_45 {dimension_numbers = #tpu.dot_dimension_numbers<[1], [0], [0], [1], [0, 0, 1, 1], [], []>} : vector<2x128xbf16>, vector<128x256xbf16>, vector<2x256xf32> -> vector<2x256xf32>
    %c0_46 = arith.constant 0 : index
    %c0_47 = arith.constant 0 : index
    %c0_48 = arith.constant 0 : index
    %69 = vector.load %arg12[%c0_46, %c0_47, %c0_48] : memref<1x1x256xf32, #tpu.memory_space<vmem>>, vector<1x1x256xf32>
    %70 = vector.shape_cast %69 : vector<1x1x256xf32> to vector<1x256xf32>
    %71 = vector.broadcast %70 : vector<1x256xf32> to vector<2x256xf32>
    %72 = arith.addf %68, %71 : vector<2x256xf32>
    %73 = arith.negf %72 : vector<2x256xf32>
    %74 = math.exp %73 : vector<2x256xf32>
    %cst_49 = arith.constant 1.000000e+00 : f32
    %75 = vector.broadcast %cst_49 : f32 to vector<2x256xf32>
    %76 = arith.addf %75, %74 : vector<2x256xf32>
    %77 = arith.divf %75, %76 : vector<2x256xf32>
    %c0_50 = arith.constant 0 : index
    %c0_51 = arith.constant 0 : index
    %c0_52 = arith.constant 0 : index
    %78 = vector.load %arg13[%c0_50, %c0_51, %c0_52] : memref<1x2x256xf32, #tpu.memory_space<vmem>>, vector<1x2x256xf32>
    %79 = vector.shape_cast %78 : vector<1x2x256xf32> to vector<2x256xf32>
    %80 = vector.shape_cast %77 : vector<2x256xf32> to vector<1x2x256xf32>
    tpu.vector_store %arg13[%c0_50, %c0_51, %c0_52], %80 {strides = array<i32>} : memref<1x2x256xf32, #tpu.memory_space<vmem>>, vector<1x2x256xf32>,
    return
  }
  func.func @transform_0(%arg0: i32) -> (i32, i32) {
    %c0_i32 = arith.constant 0 : i32
    %c0_i32_0 = arith.constant 0 : i32
    %c0_i32_1 = arith.constant 0 : i32
    return %c0_i32, %c0_i32_0 : i32, i32
  }
  func.func @transform_1(%arg0: i32) -> (i32, i32) {
    %c0_i32 = arith.constant 0 : i32
    %c0_i32_0 = arith.constant 0 : i32
    %c0_i32_1 = arith.constant 0 : i32
    return %c0_i32, %c0_i32_0 : i32, i32
  }
  func.func @transform_2(%arg0: i32) -> (i32, i32, i32) {
    %c0_i32 = arith.constant 0 : i32
    %c0_i32_0 = arith.constant 0 : i32
    %c0_i32_1 = arith.constant 0 : i32
    return %arg0, %c0_i32, %c0_i32_0 : i32, i32, i32
  }
  func.func @transform_3(%arg0: i32) -> (i32, i32, i32) {
    %c0_i32 = arith.constant 0 : i32
    %c0_i32_0 = arith.constant 0 : i32
    %c0_i32_1 = arith.constant 0 : i32
    return %arg0, %c0_i32, %c0_i32_0 : i32, i32, i32
  }
  func.func @transform_4(%arg0: i32) -> (i32, i32, i32) {
    %c0_i32 = arith.constant 0 : i32
    %c0_i32_0 = arith.constant 0 : i32
    %c0_i32_1 = arith.constant 0 : i32
    return %arg0, %c0_i32, %c0_i32_0 : i32, i32, i32
  }
  func.func @transform_5(%arg0: i32) -> (i32, i32, i32) {
    %c0_i32 = arith.constant 0 : i32
    %c0_i32_0 = arith.constant 0 : i32
    %c0_i32_1 = arith.constant 0 : i32
    return %arg0, %c0_i32, %c0_i32_0 : i32, i32, i32
  }
  func.func @transform_6(%arg0: i32) -> (i32, i32, i32) {
    %c0_i32 = arith.constant 0 : i32
    %c0_i32_0 = arith.constant 0 : i32
    %c0_i32_1 = arith.constant 0 : i32
    return %arg0, %c0_i32, %c0_i32_0 : i32, i32, i32
  }
  func.func @transform_7(%arg0: i32) -> (i32, i32, i32) {
    %c0_i32 = arith.constant 0 : i32
    %c0_i32_0 = arith.constant 0 : i32
    %c0_i32_1 = arith.constant 0 : i32
    return %arg0, %c0_i32, %c0_i32_0 : i32, i32, i32
  }
  func.func @transform_8(%arg0: i32) -> (i32, i32, i32) {
    %c0_i32 = arith.constant 0 : i32
    %c0_i32_0 = arith.constant 0 : i32
    %c0_i32_1 = arith.constant 0 : i32
    return %arg0, %c0_i32, %c0_i32_0 : i32, i32, i32
  }
  func.func @transform_9(%arg0: i32) -> (i32, i32, i32) {
    %c0_i32 = arith.constant 0 : i32
    %c0_i32_0 = arith.constant 0 : i32
    %c0_i32_1 = arith.constant 0 : i32
    return %arg0, %c0_i32, %c0_i32_0 : i32, i32, i32
  }
  func.func @transform_10(%arg0: i32) -> (i32, i32, i32) {
    %c0_i32 = arith.constant 0 : i32
    %c0_i32_0 = arith.constant 0 : i32
    %c0_i32_1 = arith.constant 0 : i32
    return %arg0, %c0_i32, %c0_i32_0 : i32, i32, i32
  }
  func.func @transform_11(%arg0: i32) -> (i32, i32, i32) {
    %c0_i32 = arith.constant 0 : i32
    %c0_i32_0 = arith.constant 0 : i32
    %c0_i32_1 = arith.constant 0 : i32
    return %arg0, %c0_i32, %c0_i32_0 : i32, i32, i32
  }
  func.func @transform_12(%arg0: i32) -> (i32, i32, i32) {
    %c0_i32 = arith.constant 0 : i32
    %c0_i32_0 = arith.constant 0 : i32
    %c0_i32_1 = arith.constant 0 : i32
    return %arg0, %c0_i32, %c0_i32_0 : i32, i32, i32
  }
  func.func @transform_13(%arg0: i32) -> (i32, i32, i32) {
    %c0_i32 = arith.constant 0 : i32
    %c0_i32_0 = arith.constant 0 : i32
    %c0_i32_1 = arith.constant 0 : i32
    return %arg0, %c0_i32, %c0_i32_0 : i32, i32, i32
  }
}

</mosaic_0001>

<llo_original>
// kernel: tpu_custom_call.1
$region0: #{tpu_custom_call.1}
  #allocation0 [shape = 'u32[]', space=smem, size = 0x4, offset = 0x4, fixed_abs, tag = 'smem constant byte address 0x4 - core index']
  #allocation1 [shape = 'u32[144,128]{1,0:T(1,128)}', space=vmem, size = 0x12000, scoped, tag = 'internal scratch']
  %s0 = inlined_call_operand.vmem [shape: f32[2,256], index: 0, kind: input, shape index: {}]
  %s1 = inlined_call_operand.vmem [shape: f32[2,256], index: 1, kind: input, shape index: {}]
  %s2 = inlined_call_operand.vmem [shape: f32[2,2,1], index: 2, kind: input, shape index: {}]
  %s3 = inlined_call_operand.vmem [shape: f32[2,2,256], index: 3, kind: input, shape index: {}]
  %s4 = inlined_call_operand.hbm [shape: bf16[2,256,128], index: 4, kind: input, shape index: {}]
  %s5 = inlined_call_operand.hbm [shape: f32[2,1,128], index: 5, kind: input, shape index: {}]
  %s6 = inlined_call_operand.hbm [shape: bf16[2,128,256], index: 6, kind: input, shape index: {}]
  %s7 = inlined_call_operand.vmem [shape: f32[2,1,256], index: 7, kind: input, shape index: {}]
  %s8 = inlined_call_operand.hbm [shape: bf16[2,256,128], index: 8, kind: input, shape index: {}]
  %s9 = inlined_call_operand.vmem [shape: f32[2,1,128], index: 9, kind: input, shape index: {}]
  %s10 = inlined_call_operand.hbm [shape: bf16[2,128,256], index: 10, kind: input, shape index: {}]
  %s11 = inlined_call_operand.vmem [shape: f32[2,1,256], index: 11, kind: input, shape index: {}]
  %s12 = inlined_call_operand.hbm [shape: f32[2,2,256], index: 12, kind: output, shape index: {0}]
  %s13 = inlined_call_operand.hbm [shape: f32[2,2,256], index: 13, kind: output, shape index: {1}]
  %14 = xla_tuple %s12, %s13
  %s15 = sld [smem:[#allocation0]]
  $region109: #{tpu_custom_call.1} parent=0
    _
  %s17 = ssub.s32 1, %s15
  %s18 = scalar_select 0, %s17, %s15
  $region1: #{tpu_custom_call.1} parent=0
    #allocation2 [shape = 'u8[131072]{0}', space=vmem, size = 0x20000, scoped, tag = 'input window, operand 4']
    #allocation3 [shape = 's32[2]{0}', space=sflag, size = 0x8, scoped, tag = 'scoped memory for tpu_custom_call.1']
    #allocation4 [shape = 's32[2]{0}', space=sflag, size = 0x8, scoped, tag = 'scoped memory for tpu_custom_call.1']
    #allocation5 [shape = 'u8[1024]{0}', space=vmem, size = 0x400, scoped, tag = 'input window, operand 5']
    #allocation6 [shape = 's32[2]{0}', space=sflag, size = 0x8, scoped, tag = 'scoped memory for tpu_custom_call.1']
    #allocation7 [shape = 'u8[131072]{0}', space=vmem, size = 0x20000, scoped, tag = 'input window, operand 6']
    #allocation8 [shape = 'u8[131072]{0}', space=vmem, size = 0x20000, scoped, tag = 'input window, operand 8']
    #allocation9 [shape = 's32[2]{0}', space=sflag, size = 0x8, scoped, tag = 'scoped memory for tpu_custom_call.1']
    #allocation10 [shape = 'u8[131072]{0}', space=vmem, size = 0x20000, scoped, tag = 'input window, operand 10']
    #allocation11 [shape = 'u8[4096]{0}', space=vmem, size = 0x1000, scoped, tag = 'output window, operand 0']
    #allocation12 [shape = 'u8[4096]{0}', space=vmem, size = 0x1000, scoped, tag = 'output window, operand 1']
    #allocation13 [shape = 's32[2]{0}', space=sflag, size = 0x8, scoped, tag = 'scoped memory for tpu_custom_call.1']
    %19 = vsyncpa [#allocation3], 0
    %s20 = scalar_lea.sflag [#allocation3], 1
    %21 = vsyncpa %s20, 0
    %22 = vsyncpa [#allocation6], 0
    %s23 = scalar_lea.sflag [#allocation6], 1
    %24 = vsyncpa %s23, 0
    %25 = vsyncpa [#allocation9], 0
    %s26 = scalar_lea.sflag [#allocation9], 1
    %27 = vsyncpa %s26, 0
    %28 = vsyncpa [#allocation4], 0
    %s29 = scalar_lea.sflag [#allocation4], 1
    %30 = vsyncpa %s29, 0
    %31 = vsyncpa [#allocation13], 0
    %s32 = scalar_lea.sflag [#allocation13], 1
    %33 = vsyncpa %s32, 0
    loop: start=0, step=1, limit=4
    $region2: #{tpu_custom_call.1} parent=1 // loop_pre_header
      _
    $region3: #{tpu_custom_call.1} parent=1 // loop_header
      %s35 = sphi 0, %s39
      %p36 = scmp.ge.s32.totalorder %s35, 4
      %s43 = sphi 0, %s43
      %s45 = sphi 0, %s43
      %s46 = sphi 0, %s45
      %s60 = sphi 0, %s46
      %s64 = sphi 0, %s64
      %s66 = sphi 0, %s64
      %s67 = sphi 0, %s66
      %s81 = sphi 0, %s67
      %s87 = sphi 0, %s89
      %s90 = sphi 0, %s87
      %s91 = sphi 0, %s90
      %s107 = sphi 0, %s91
      %s113 = sphi 0, %s115
      %s116 = sphi 0, %s113
      %s117 = sphi 0, %s116
      %s133 = sphi 0, %s117
      %s139 = sphi 0, %s141
      %s142 = sphi 0, %s139
      %s143 = sphi 0, %s142
      %s159 = sphi 0, %s143
      %s165 = sphi 0, %s167
      %s168 = sphi 0, %s165
      %s169 = sphi 0, %s168
      %s185 = sphi 0, %s169
      %s191 = sphi 0, %s193
      %s194 = sphi 0, %s191
      %s195 = sphi 0, %s194
      %s211 = sphi 0, %s195
      %s217 = sphi 0, %s219
      %s220 = sphi 0, %s217
      %s221 = sphi 0, %s220
      %s237 = sphi 0, %s221
      %s243 = sphi 0, %s245
      %s246 = sphi 0, %s243
      %s247 = sphi 0, %s246
      %s263 = sphi 0, %s247
      %s269 = sphi 0, %s271
      %s272 = sphi 0, %s269
      %s273 = sphi 0, %s272
      %s289 = sphi 0, %s273
      %s295 = sphi 0, %s297
      %s298 = sphi 0, %s295
      %s299 = sphi 0, %s298
      %s315 = sphi 0, %s299
      %s321 = sphi 0, %s323
      %s324 = sphi 0, %s321
      %s325 = sphi 0, %s324
      %s341 = sphi 0, %s325
      %s347 = sphi 0, %s349
      %s350 = sphi 0, %s347
      %s351 = sphi 0, %s350
      %s367 = sphi 0, %s351
      %s373 = sphi 0, %s375
      %s376 = sphi 0, %s373
      %s377 = sphi 0, %s376
      %s393 = sphi 0, %s377
    $region4: #{tpu_custom_call.1} parent=1 // loop_header_branch
      %38 = sbr.rel (%p36) target = $region8
    $region5: #{tpu_custom_call.1} parent=1 // loop_body
      %s40 = ssub.s32 %s35, 1
      %s41 = ssub.s32 %s35, 2
      %s42 = sadd.s32 %s35, 1
      %s44 = sadd.s32 %s43, 1
      %p47 = scmp.eq.s32.totalorder %s35, 1
      %p48 = scmp.ne.s32.totalorder %s43, %s45
      %p49 = scmp.eq.s32.totalorder %s35, 0
      %p50 = por %p48, %p49
      %p51 = scmp.ne.s32.totalorder %s43, %s45
      %p52 = scmp.eq.s32.totalorder %s40, 1
      %p53 = por %p51, %p52
      %p54 = scmp.ne.s32.totalorder %s45, %s46
      %p55 = scmp.eq.s32.totalorder %s40, 0
      %p56 = por %p54, %p55
      %p57 = scmp.ne.s32.totalorder %s45, %s46
      %p58 = scmp.eq.s32.totalorder %s41, 1
      %p59 = por %p57, %p58
      %p61 = scmp.ne.s32.totalorder %s46, %s60
      %p62 = scmp.eq.s32.totalorder %s41, 0
      %p63 = por %p61, %p62
      %s65 = sadd.s32 %s64, 1
      %p68 = scmp.eq.s32.totalorder %s35, 1
      %p69 = scmp.ne.s32.totalorder %s64, %s66
      %p70 = scmp.eq.s32.totalorder %s35, 0
      %p71 = por %p69, %p70
      %p72 = scmp.ne.s32.totalorder %s64, %s66
      %p73 = scmp.eq.s32.totalorder %s40, 1
      %p74 = por %p72, %p73
      %p75 = scmp.ne.s32.totalorder %s66, %s67
      %p76 = scmp.eq.s32.totalorder %s40, 0
      %p77 = por %p75, %p76
      %p78 = scmp.ne.s32.totalorder %s66, %s67
      %p79 = scmp.eq.s32.totalorder %s41, 1
      %p80 = por %p78, %p79
      %p82 = scmp.ne.s32.totalorder %s67, %s81
      %p83 = scmp.eq.s32.totalorder %s41, 0
      %p84 = por %p82, %p83
      %s85 = ssub.s32 %s35, %s42
      %p86 = scmp.eq.s32.totalorder %s85, 0
      %s88 = sadd.s32 %s87, 1
      %s89 = scalar_select %p86, %s87, %s88
      %p92 = pneg %p86
      %p93 = scmp.eq.s32.totalorder %s35, 1
      %p94 = por %p92, %p93
      %p95 = scmp.ne.s32.totalorder %s87, %s90
      %p96 = scmp.eq.s32.totalorder %s35, 0
      %p97 = por %p95, %p96
      %p98 = scmp.ne.s32.totalorder %s87, %s90
      %p99 = scmp.eq.s32.totalorder %s40, 1
      %p100 = por %p98, %p99
      %p101 = scmp.ne.s32.totalorder %s90, %s91
      %p102 = scmp.eq.s32.totalorder %s40, 0
      %p103 = por %p101, %p102
      %p104 = scmp.ne.s32.totalorder %s90, %s91
      %p105 = scmp.eq.s32.totalorder %s41, 1
      %p106 = por %p104, %p105
      %p108 = scmp.ne.s32.totalorder %s91, %s107
      %p109 = scmp.eq.s32.totalorder %s41, 0
      %p110 = por %p108, %p109
      %s111 = ssub.s32 %s35, %s42
      %p112 = scmp.eq.s32.totalorder %s111, 0
      %s114 = sadd.s32 %s113, 1
      %s115 = scalar_select %p112, %s113, %s114
      %p118 = pneg %p112
      %p119 = scmp.eq.s32.totalorder %s35, 1
      %p120 = por %p118, %p119
      %p121 = scmp.ne.s32.totalorder %s113, %s116
      %p122 = scmp.eq.s32.totalorder %s35, 0
      %p123 = por %p121, %p122
      %p124 = scmp.ne.s32.totalorder %s113, %s116
      %p125 = scmp.eq.s32.totalorder %s40, 1
      %p126 = por %p124, %p125
      %p127 = scmp.ne.s32.totalorder %s116, %s117
      %p128 = scmp.eq.s32.totalorder %s40, 0
      %p129 = por %p127, %p128
      %p130 = scmp.ne.s32.totalorder %s116, %s117
      %p131 = scmp.eq.s32.totalorder %s41, 1
      %p132 = por %p130, %p131
      %p134 = scmp.ne.s32.totalorder %s117, %s133
      %p135 = scmp.eq.s32.totalorder %s41, 0
      %p136 = por %p134, %p135
      %s137 = ssub.s32 %s35, %s42
      %p138 = scmp.eq.s32.totalorder %s137, 0
      %s140 = sadd.s32 %s139, 1
      %s141 = scalar_select %p138, %s139, %s140
      %p144 = pneg %p138
      %p145 = scmp.eq.s32.totalorder %s35, 1
      %p146 = por %p144, %p145
      %p147 = scmp.ne.s32.totalorder %s139, %s142
      %p148 = scmp.eq.s32.totalorder %s35, 0
      %p149 = por %p147, %p148
      %p150 = scmp.ne.s32.totalorder %s139, %s142
      %p151 = scmp.eq.s32.totalorder %s40, 1
      %p152 = por %p150, %p151
      %p153 = scmp.ne.s32.totalorder %s142, %s143
      %p154 = scmp.eq.s32.totalorder %s40, 0
      %p155 = por %p153, %p154
      %p156 = scmp.ne.s32.totalorder %s142, %s143
      %p157 = scmp.eq.s32.totalorder %s41, 1
      %p158 = por %p156, %p157
      %p160 = scmp.ne.s32.totalorder %s143, %s159
      %p161 = scmp.eq.s32.totalorder %s41, 0
      %p162 = por %p160, %p161
      %s163 = ssub.s32 %s35, %s42
      %p164 = scmp.eq.s32.totalorder %s163, 0
      %s166 = sadd.s32 %s165, 1
      %s167 = scalar_select %p164, %s165, %s166
      %p170 = pneg %p164
      %p171 = scmp.eq.s32.totalorder %s35, 1
      %p172 = por %p170, %p171
      %p173 = scmp.ne.s32.totalorder %s165, %s168
      %p174 = scmp.eq.s32.totalorder %s35, 0
      %p175 = por %p173, %p174
      %p176 = scmp.ne.s32.totalorder %s165, %s168
      %p177 = scmp.eq.s32.totalorder %s40, 1
      %p178 = por %p176, %p177
      %p179 = scmp.ne.s32.totalorder %s168, %s169
      %p180 = scmp.eq.s32.totalorder %s40, 0
      %p181 = por %p179, %p180
      %p182 = scmp.ne.s32.totalorder %s168, %s169
      %p183 = scmp.eq.s32.totalorder %s41, 1
      %p184 = por %p182, %p183
      %p186 = scmp.ne.s32.totalorder %s169, %s185
      %p187 = scmp.eq.s32.totalorder %s41, 0
      %p188 = por %p186, %p187
      %s189 = ssub.s32 %s35, %s42
      %p190 = scmp.eq.s32.totalorder %s189, 0
      %s192 = sadd.s32 %s191, 1
      %s193 = scalar_select %p190, %s191, %s192
      %p196 = pneg %p190
      %p197 = scmp.eq.s32.totalorder %s35, 1
      %p198 = por %p196, %p197
      %p199 = scmp.ne.s32.totalorder %s191, %s194
      %p200 = scmp.eq.s32.totalorder %s35, 0
      %p201 = por %p199, %p200
      %p202 = scmp.ne.s32.totalorder %s191, %s194
      %p203 = scmp.eq.s32.totalorder %s40, 1
      %p204 = por %p202, %p203
      %p205 = scmp.ne.s32.totalorder %s194, %s195
      %p206 = scmp.eq.s32.totalorder %s40, 0
      %p207 = por %p205, %p206
      %p208 = scmp.ne.s32.totalorder %s194, %s195
      %p209 = scmp.eq.s32.totalorder %s41, 1
      %p210 = por %p208, %p209
      %p212 = scmp.ne.s32.totalorder %s195, %s211
      %p213 = scmp.eq.s32.totalorder %s41, 0
      %p214 = por %p212, %p213
      %s215 = ssub.s32 %s35, %s42
      %p216 = scmp.eq.s32.totalorder %s215, 0
      %s218 = sadd.s32 %s217, 1
      %s219 = scalar_select %p216, %s217, %s218
      %p222 = pneg %p216
      %p223 = scmp.eq.s32.totalorder %s35, 1
      %p224 = por %p222, %p223
      %p225 = scmp.ne.s32.totalorder %s217, %s220
      %p226 = scmp.eq.s32.totalorder %s35, 0
      %p227 = por %p225, %p226
      %p228 = scmp.ne.s32.totalorder %s217, %s220
      %p229 = scmp.eq.s32.totalorder %s40, 1
      %p230 = por %p228, %p229
      %p231 = scmp.ne.s32.totalorder %s220, %s221
      %p232 = scmp.eq.s32.totalorder %s40, 0
      %p233 = por %p231, %p232
      %p234 = scmp.ne.s32.totalorder %s220, %s221
      %p235 = scmp.eq.s32.totalorder %s41, 1
      %p236 = por %p234, %p235
      %p238 = scmp.ne.s32.totalorder %s221, %s237
      %p239 = scmp.eq.s32.totalorder %s41, 0
      %p240 = por %p238, %p239
      %s241 = ssub.s32 %s35, %s42
      %p242 = scmp.eq.s32.totalorder %s241, 0
      %s244 = sadd.s32 %s243, 1
      %s245 = scalar_select %p242, %s243, %s244
      %p248 = pneg %p242
      %p249 = scmp.eq.s32.totalorder %s35, 1
      %p250 = por %p248, %p249
      %p251 = scmp.ne.s32.totalorder %s243, %s246
      %p252 = scmp.eq.s32.totalorder %s35, 0
      %p253 = por %p251, %p252
      %p254 = scmp.ne.s32.totalorder %s243, %s246
      %p255 = scmp.eq.s32.totalorder %s40, 1
      %p256 = por %p254, %p255
      %p257 = scmp.ne.s32.totalorder %s246, %s247
      %p258 = scmp.eq.s32.totalorder %s40, 0
      %p259 = por %p257, %p258
      %p260 = scmp.ne.s32.totalorder %s246, %s247
      %p261 = scmp.eq.s32.totalorder %s41, 1
      %p262 = por %p260, %p261
      %p264 = scmp.ne.s32.totalorder %s247, %s263
      %p265 = scmp.eq.s32.totalorder %s41, 0
      %p266 = por %p264, %p265
      %s267 = ssub.s32 %s35, %s42
      %p268 = scmp.eq.s32.totalorder %s267, 0
      %s270 = sadd.s32 %s269, 1
      %s271 = scalar_select %p268, %s269, %s270
      %p274 = pneg %p268
      %p275 = scmp.eq.s32.totalorder %s35, 1
      %p276 = por %p274, %p275
      %p277 = scmp.ne.s32.totalorder %s269, %s272
      %p278 = scmp.eq.s32.totalorder %s35, 0
      %p279 = por %p277, %p278
      %p280 = scmp.ne.s32.totalorder %s269, %s272
      %p281 = scmp.eq.s32.totalorder %s40, 1
      %p282 = por %p280, %p281
      %p283 = scmp.ne.s32.totalorder %s272, %s273
      %p284 = scmp.eq.s32.totalorder %s40, 0
      %p285 = por %p283, %p284
      %p286 = scmp.ne.s32.totalorder %s272, %s273
      %p287 = scmp.eq.s32.totalorder %s41, 1
      %p288 = por %p286, %p287
      %p290 = scmp.ne.s32.totalorder %s273, %s289
      %p291 = scmp.eq.s32.totalorder %s41, 0
      %p292 = por %p290, %p291
      %s293 = ssub.s32 %s35, %s42
      %p294 = scmp.eq.s32.totalorder %s293, 0
      %s296 = sadd.s32 %s295, 1
      %s297 = scalar_select %p294, %s295, %s296
      %p300 = pneg %p294
      %p301 = scmp.eq.s32.totalorder %s35, 1
      %p302 = por %p300, %p301
      %p303 = scmp.ne.s32.totalorder %s295, %s298
      %p304 = scmp.eq.s32.totalorder %s35, 0
      %p305 = por %p303, %p304
      %p306 = scmp.ne.s32.totalorder %s295, %s298
      %p307 = scmp.eq.s32.totalorder %s40, 1
      %p308 = por %p306, %p307
      %p309 = scmp.ne.s32.totalorder %s298, %s299
      %p310 = scmp.eq.s32.totalorder %s40, 0
      %p311 = por %p309, %p310
      %p312 = scmp.ne.s32.totalorder %s298, %s299
      %p313 = scmp.eq.s32.totalorder %s41, 1
      %p314 = por %p312, %p313
      %p316 = scmp.ne.s32.totalorder %s299, %s315
      %p317 = scmp.eq.s32.totalorder %s41, 0
      %p318 = por %p316, %p317
      %s319 = ssub.s32 %s35, %s42
      %p320 = scmp.eq.s32.totalorder %s319, 0
      %s322 = sadd.s32 %s321, 1
      %s323 = scalar_select %p320, %s321, %s322
      %p326 = pneg %p320
      %p327 = scmp.eq.s32.totalorder %s35, 1
      %p328 = por %p326, %p327
      %p329 = scmp.ne.s32.totalorder %s321, %s324
      %p330 = scmp.eq.s32.totalorder %s35, 0
      %p331 = por %p329, %p330
      %p332 = scmp.ne.s32.totalorder %s321, %s324
      %p333 = scmp.eq.s32.totalorder %s40, 1
      %p334 = por %p332, %p333
      %p335 = scmp.ne.s32.totalorder %s324, %s325
      %p336 = scmp.eq.s32.totalorder %s40, 0
      %p337 = por %p335, %p336
      %p338 = scmp.ne.s32.totalorder %s324, %s325
      %p339 = scmp.eq.s32.totalorder %s41, 1
      %p340 = por %p338, %p339
      %p342 = scmp.ne.s32.totalorder %s325, %s341
      %p343 = scmp.eq.s32.totalorder %s41, 0
      %p344 = por %p342, %p343
      %s345 = ssub.s32 %s35, %s42
      %p346 = scmp.eq.s32.totalorder %s345, 0
      %s348 = sadd.s32 %s347, 1
      %s349 = scalar_select %p346, %s347, %s348
      %p352 = pneg %p346
      %p353 = scmp.eq.s32.totalorder %s35, 1
      %p354 = por %p352, %p353
      %p355 = scmp.ne.s32.totalorder %s347, %s350
      %p356 = scmp.eq.s32.totalorder %s35, 0
      %p357 = por %p355, %p356
      %p358 = scmp.ne.s32.totalorder %s347, %s350
      %p359 = scmp.eq.s32.totalorder %s40, 1
      %p360 = por %p358, %p359
      %p361 = scmp.ne.s32.totalorder %s350, %s351
      %p362 = scmp.eq.s32.totalorder %s40, 0
      %p363 = por %p361, %p362
      %p364 = scmp.ne.s32.totalorder %s350, %s351
      %p365 = scmp.eq.s32.totalorder %s41, 1
      %p366 = por %p364, %p365
      %p368 = scmp.ne.s32.totalorder %s351, %s367
      %p369 = scmp.eq.s32.totalorder %s41, 0
      %p370 = por %p368, %p369
      %s371 = ssub.s32 %s35, %s42
      %p372 = scmp.eq.s32.totalorder %s371, 0
      %s374 = sadd.s32 %s373, 1
      %s375 = scalar_select %p372, %s373, %s374
      %p378 = pneg %p372
      %p379 = scmp.eq.s32.totalorder %s35, 1
      %p380 = por %p378, %p379
      %p381 = scmp.ne.s32.totalorder %s373, %s376
      %p382 = scmp.eq.s32.totalorder %s35, 0
      %p383 = por %p381, %p382
      %p384 = scmp.ne.s32.totalorder %s373, %s376
      %p385 = scmp.eq.s32.totalorder %s40, 1
      %p386 = por %p384, %p385
      %p387 = scmp.ne.s32.totalorder %s376, %s377
      %p388 = scmp.eq.s32.totalorder %s40, 0
      %p389 = por %p387, %p388
      %p390 = scmp.ne.s32.totalorder %s376, %s377
      %p391 = scmp.eq.s32.totalorder %s41, 1
      %p392 = por %p390, %p391
      %p394 = scmp.ne.s32.totalorder %s377, %s393
      %p395 = scmp.eq.s32.totalorder %s41, 0
      %p396 = por %p394, %p395
      %p397 = scmp.le.s32.totalorder 1, %s35
      %p398 = scmp.lt.s32.totalorder %s35, 3
      %p399 = pnand %p397, %p398
      %p400 = pneg %p399
      // Predicated region
      $region9: #{tpu_custom_call.1} parent=5 // pred_check
        _
      $region10: #{tpu_custom_call.1} parent=5 // pred_check_branch
        %402 = sbr.rel (%p399) target = $region12
      $region11: #{tpu_custom_call.1} parent=5 // pred_region
        %s403 = ssub.s32 %s35, 1
        // Predicated region
        $region13: #{tpu_custom_call.1} parent=11 // pred_check
          %p404 = pneg %p56
        $region14: #{tpu_custom_call.1} parent=11 // pred_check_branch
          %406 = sbr.rel (%p404) target = $region16
        $region15: #{tpu_custom_call.1} parent=11 // pred_region
          _
        $region16: #{tpu_custom_call.1} parent=11 // pred_fallthru
          _
        // Predicated region
        $region17: #{tpu_custom_call.1} parent=11 // pred_check
          %p407 = pneg %p77
        $region18: #{tpu_custom_call.1} parent=11 // pred_check_branch
          %409 = sbr.rel (%p407) target = $region20
        $region19: #{tpu_custom_call.1} parent=11 // pred_region
          _
        $region20: #{tpu_custom_call.1} parent=11 // pred_fallthru
          _
      $region12: #{tpu_custom_call.1} parent=5 // pred_fallthru
        _
      %p410 = scmp.lt.s32.totalorder %s35, 2
      // Predicated region
      $region21: #{tpu_custom_call.1} parent=5 // pred_check
        %p411 = pneg %p410
      $region22: #{tpu_custom_call.1} parent=5 // pred_check_branch
        %413 = sbr.rel (%p411) target = $region24
      $region23: #{tpu_custom_call.1} parent=5 // pred_region
        // Predicated region
        $region25: #{tpu_custom_call.1} parent=23 // pred_check
          %p414 = pneg %p97
        $region26: #{tpu_custom_call.1} parent=23 // pred_check_branch
          %416 = sbr.rel (%p414) target = $region28
        $region27: #{tpu_custom_call.1} parent=23 // pred_region
          %p417 = scmp.lt.s32.totalorder %s35, 1
          %s418 = scalar_select %p417, %s35, 1
          %s419 = smul.addr %s418, 2
          %s420 = scalar_lea.vmem %s2, %s419
        $region28: #{tpu_custom_call.1} parent=23 // pred_fallthru
          _
        // Predicated region
        $region29: #{tpu_custom_call.1} parent=23 // pred_check
          %p421 = pneg %p123
        $region30: #{tpu_custom_call.1} parent=23 // pred_check_branch
          %423 = sbr.rel (%p421) target = $region32
        $region31: #{tpu_custom_call.1} parent=23 // pred_region
          %p424 = scmp.lt.s32.totalorder %s35, 1
          %s425 = scalar_select %p424, %s35, 1
          %s426 = smul.addr %s425, 2
          %s427 = smul.addr %s426, 2
          %s428 = scalar_lea.vmem %s3, %s427
        $region32: #{tpu_custom_call.1} parent=23 // pred_fallthru
          _
        // Predicated region
        $region33: #{tpu_custom_call.1} parent=23 // pred_check
          %p429 = pneg %p149
        $region34: #{tpu_custom_call.1} parent=23 // pred_check_branch
          %431 = sbr.rel (%p429) target = $region36
        $region35: #{tpu_custom_call.1} parent=23 // pred_region
          %s432 = sand.u32 %s139, 1
          %s433 = scalar_lea.sflag [#allocation3], %s432
          %s434 = sand.u32 %s139, 1
          %s435 = smul.addr %s434, 128
          %s436 = scalar_lea.vmem [#allocation2], %s435
          %s438 = ssub.s32 2048, 2048
          %439 = vsyncadd %s433, %s438
          %s440 = smul.addr %s35, 32
          %s441 = smul.addr %s440, 64
          %s442 = scalar_lea.hbm %s4, %s441
          %s443 = sshll.u32 %s436, 4
          %s444 = int_to_ptr.vmem [resolvable:$true] %s443
          %449 = dma.hbm_to_vmem [thread:$0]  %s442, 2048, %s444, %s433, 64, 64, 4
        $region36: #{tpu_custom_call.1} parent=23 // pred_fallthru
          _
        // Predicated region
        $region37: #{tpu_custom_call.1} parent=23 // pred_check
          %p450 = pneg %p175
        $region38: #{tpu_custom_call.1} parent=23 // pred_check_branch
          %452 = sbr.rel (%p450) target = $region40
        $region39: #{tpu_custom_call.1} parent=23 // pred_region
          %s453 = sand.u32 %s35, 1
          %s454 = scalar_lea.sflag [#allocation6], %s453
          %s455 = sand.u32 %s165, 1
          %s456 = scalar_lea.vmem [#allocation5], %s455
          %s458 = ssub.s32 16, 16
          %459 = vsyncadd %s454, %s458
          %s460 = smul.addr %s35, 16
          %s461 = scalar_lea.hbm %s5, %s460
          %s463 = sshll.u32 %s456, 4
          %s464 = int_to_ptr.vmem [resolvable:$true] %s463
          %466 = dma.hbm_to_vmem [thread:$0]  %s461, 16, %s464, %s454
        $region40: #{tpu_custom_call.1} parent=23 // pred_fallthru
          _
        // Predicated region
        $region41: #{tpu_custom_call.1} parent=23 // pred_check
          %p467 = pneg %p201
        $region42: #{tpu_custom_call.1} parent=23 // pred_check_branch
          %469 = sbr.rel (%p467) target = $region44
        $region43: #{tpu_custom_call.1} parent=23 // pred_region
          %s470 = sand.u32 %s35, 1
          %s471 = scalar_lea.sflag [#allocation6], %s470
          %s472 = sand.u32 %s191, 1
          %s473 = smul.addr %s472, 128
          %s474 = scalar_lea.vmem [#allocation7], %s473
          %s476 = ssub.s32 2048, 2048
          %477 = vsyncadd %s471, %s476
          %s478 = smul.addr %s35, 32
          %s479 = smul.addr %s478, 64
          %s480 = scalar_lea.hbm %s6, %s479
          %s481 = sshll.u32 %s474, 4
          %s482 = int_to_ptr.vmem [resolvable:$true] %s481
          %487 = dma.hbm_to_vmem [thread:$0]  %s480, 2048, %s482, %s471, 128, 128, 8
        $region44: #{tpu_custom_call.1} parent=23 // pred_fallthru
          _
        // Predicated region
        $region45: #{tpu_custom_call.1} parent=23 // pred_check
          %p488 = pneg %p227
        $region46: #{tpu_custom_call.1} parent=23 // pred_check_branch
          %490 = sbr.rel (%p488) target = $region48
        $region47: #{tpu_custom_call.1} parent=23 // pred_region
          %p491 = scmp.lt.s32.totalorder %s35, 1
          %s492 = scalar_select %p491, %s35, 1
          %s493 = smul.addr %s492, 2
          %s494 = scalar_lea.vmem %s7, %s493
        $region48: #{tpu_custom_call.1} parent=23 // pred_fallthru
          _
        // Predicated region
        $region49: #{tpu_custom_call.1} parent=23 // pred_check
          %p495 = pneg %p253
        $region50: #{tpu_custom_call.1} parent=23 // pred_check_branch
          %497 = sbr.rel (%p495) target = $region52
        $region51: #{tpu_custom_call.1} parent=23 // pred_region
          %s498 = sand.u32 %s35, 1
          %s499 = scalar_lea.sflag [#allocation9], %s498
          %s500 = sand.u32 %s243, 1
          %s501 = smul.addr %s500, 128
          %s502 = scalar_lea.vmem [#allocation8], %s501
          %s504 = ssub.s32 2048, 2048
          %505 = vsyncadd %s499, %s504
          %s506 = smul.addr %s35, 32
          %s507 = smul.addr %s506, 64
          %s508 = scalar_lea.hbm %s8, %s507
          %s509 = sshll.u32 %s502, 4
          %s510 = int_to_ptr.vmem [resolvable:$true] %s509
          %515 = dma.hbm_to_vmem [thread:$0]  %s508, 2048, %s510, %s499, 64, 64, 4
        $region52: #{tpu_custom_call.1} parent=23 // pred_fallthru
          _
        // Predicated region
        $region53: #{tpu_custom_call.1} parent=23 // pred_check
          %p516 = pneg %p279
        $region54: #{tpu_custom_call.1} parent=23 // pred_check_branch
          %518 = sbr.rel (%p516) target = $region56
        $region55: #{tpu_custom_call.1} parent=23 // pred_region
          %p519 = scmp.lt.s32.totalorder %s35, 1
          %s520 = scalar_select %p519, %s35, 1
          %s521 = scalar_lea.vmem %s9, %s520
        $region56: #{tpu_custom_call.1} parent=23 // pred_fallthru
          _
        // Predicated region
        $region57: #{tpu_custom_call.1} parent=23 // pred_check
          %p522 = pneg %p305
        $region58: #{tpu_custom_call.1} parent=23 // pred_check_branch
          %524 = sbr.rel (%p522) target = $region60
        $region59: #{tpu_custom_call.1} parent=23 // pred_region
          %s525 = sand.u32 %s35, 1
          %s526 = scalar_lea.sflag [#allocation9], %s525
          %s527 = sand.u32 %s295, 1
          %s528 = smul.addr %s527, 128
          %s529 = scalar_lea.vmem [#allocation10], %s528
          %s531 = ssub.s32 2048, 2048
          %532 = vsyncadd %s526, %s531
          %s533 = smul.addr %s35, 32
          %s534 = smul.addr %s533, 64
          %s535 = scalar_lea.hbm %s10, %s534
          %s536 = sshll.u32 %s529, 4
          %s537 = int_to_ptr.vmem [resolvable:$true] %s536
          %542 = dma.hbm_to_vmem [thread:$0]  %s535, 2048, %s537, %s526, 128, 128, 8
        $region60: #{tpu_custom_call.1} parent=23 // pred_fallthru
          _
        // Predicated region
        $region61: #{tpu_custom_call.1} parent=23 // pred_check
          %p543 = pneg %p331
        $region62: #{tpu_custom_call.1} parent=23 // pred_check_branch
          %545 = sbr.rel (%p543) target = $region64
        $region63: #{tpu_custom_call.1} parent=23 // pred_region
          %p546 = scmp.lt.s32.totalorder %s35, 1
          %s547 = scalar_select %p546, %s35, 1
          %s548 = smul.addr %s547, 2
          %s549 = scalar_lea.vmem %s11, %s548
        $region64: #{tpu_custom_call.1} parent=23 // pred_fallthru
          _
      $region24: #{tpu_custom_call.1} parent=5 // pred_fallthru
        _
      %p550 = scmp.le.s32.totalorder 1, %s35
      %p551 = scmp.lt.s32.totalorder %s35, 3
      %p552 = pnand %p550, %p551
      %p553 = pneg %p552
      // Predicated region
      $region65: #{tpu_custom_call.1} parent=5 // pred_check
        _
      $region66: #{tpu_custom_call.1} parent=5 // pred_check_branch
        %555 = sbr.rel (%p552) target = $region68
      $region67: #{tpu_custom_call.1} parent=5 // pred_region
        %s556 = ssub.s32 %s35, 1
        %s557 = sand.u32 %s142, 1
        %s558 = scalar_lea.sflag [#allocation3], %s557
        %s559 = sand.u32 %s142, 1
        %s560 = smul.addr %s559, 128
        %s561 = scalar_lea.vmem [#allocation2], %s560
        // Predicated region
        $region69: #{tpu_custom_call.1} parent=67 // pred_check
          %p562 = pneg %p155
        $region70: #{tpu_custom_call.1} parent=67 // pred_check_branch
          %564 = sbr.rel (%p562) target = $region72
        $region71: #{tpu_custom_call.1} parent=67 // pred_region
          %565 = dma.done %s558, 2048
        $region72: #{tpu_custom_call.1} parent=67 // pred_fallthru
          _
        %s566 = sand.u32 %s40, 1
        %s567 = scalar_lea.sflag [#allocation6], %s566
        %s568 = sand.u32 %s168, 1
        %s569 = scalar_lea.vmem [#allocation5], %s568
        // Predicated region
        $region73: #{tpu_custom_call.1} parent=67 // pred_check
          %p570 = pneg %p181
        $region74: #{tpu_custom_call.1} parent=67 // pred_check_branch
          %572 = sbr.rel (%p570) target = $region76
        $region75: #{tpu_custom_call.1} parent=67 // pred_region
          %573 = dma.done %s567, 16
        $region76: #{tpu_custom_call.1} parent=67 // pred_fallthru
          _
        %s574 = sand.u32 %s40, 1
        %s575 = scalar_lea.sflag [#allocation6], %s574
        %s576 = sand.u32 %s194, 1
        %s577 = smul.addr %s576, 128
        %s578 = scalar_lea.vmem [#allocation7], %s577
        // Predicated region
        $region77: #{tpu_custom_call.1} parent=67 // pred_check
          %p579 = pneg %p207
        $region78: #{tpu_custom_call.1} parent=67 // pred_check_branch
          %581 = sbr.rel (%p579) target = $region80
        $region79: #{tpu_custom_call.1} parent=67 // pred_region
          %582 = dma.done %s575, 2048
        $region80: #{tpu_custom_call.1} parent=67 // pred_fallthru
          _
        %s583 = sand.u32 %s40, 1
        %s584 = scalar_lea.sflag [#allocation9], %s583
        %s585 = sand.u32 %s246, 1
        %s586 = smul.addr %s585, 128
        %s587 = scalar_lea.vmem [#allocation8], %s586
        // Predicated region
        $region81: #{tpu_custom_call.1} parent=67 // pred_check
          %p588 = pneg %p259
        $region82: #{tpu_custom_call.1} parent=67 // pred_check_branch
          %590 = sbr.rel (%p588) target = $region84
        $region83: #{tpu_custom_call.1} parent=67 // pred_region
          %591 = dma.done %s584, 2048
        $region84: #{tpu_custom_call.1} parent=67 // pred_fallthru
          _
        %s592 = sand.u32 %s40, 1
        %s593 = scalar_lea.sflag [#allocation9], %s592
        %s594 = sand.u32 %s298, 1
        %s595 = smul.addr %s594, 128
        %s596 = scalar_lea.vmem [#allocation10], %s595
        // Predicated region
        $region85: #{tpu_custom_call.1} parent=67 // pred_check
          %p597 = pneg %p311
        $region86: #{tpu_custom_call.1} parent=67 // pred_check_branch
          %599 = sbr.rel (%p597) target = $region88
        $region87: #{tpu_custom_call.1} parent=67 // pred_region
          %600 = dma.done %s593, 2048
        $region88: #{tpu_custom_call.1} parent=67 // pred_fallthru
          _
        %p601 = pneg %p56
        %p602 = pneg %p53
        %p603 = pneg %p77
        %p604 = pneg %p74
        %p605 = scmp.lt.s32.totalorder %s40, 1
        %s606 = scalar_select %p605, %s40, 1
        %s607 = smul.addr %s606, 2
        %s608 = scalar_lea.vmem %s2, %s607
        %p609 = pneg %p103
        %p610 = pneg %p100
        %p611 = scmp.lt.s32.totalorder %s40, 1
        %s612 = scalar_select %p611, %s40, 1
        %s613 = smul.addr %s612, 2
        %s614 = smul.addr %s613, 2
        %s615 = scalar_lea.vmem %s3, %s614
        %p616 = pneg %p129
        %p617 = pneg %p126
        %s618 = sand.u32 %s142, 1
        %s619 = scalar_lea.sflag [#allocation3], %s618
        %s620 = sand.u32 %s142, 1
        %s621 = smul.addr %s620, 128
        %s622 = scalar_lea.vmem [#allocation2], %s621
        %p623 = pneg %p155
        %p624 = pneg %p152
        %s625 = sand.u32 %s40, 1
        %s626 = scalar_lea.sflag [#allocation6], %s625
        %s627 = sand.u32 %s168, 1
        %s628 = scalar_lea.vmem [#allocation5], %s627
        %p629 = pneg %p181
        %p630 = pneg %p178
        %s631 = sand.u32 %s40, 1
        %s632 = scalar_lea.sflag [#allocation6], %s631
        %s633 = sand.u32 %s194, 1
        %s634 = smul.addr %s633, 128
        %s635 = scalar_lea.vmem [#allocation7], %s634
        %p636 = pneg %p207
        %p637 = pneg %p204
        %p638 = scmp.lt.s32.totalorder %s40, 1
        %s639 = scalar_select %p638, %s40, 1
        %s640 = smul.addr %s639, 2
        %s641 = scalar_lea.vmem %s7, %s640
        %p642 = pneg %p233
        %p643 = pneg %p230
        %s644 = sand.u32 %s40, 1
        %s645 = scalar_lea.sflag [#allocation9], %s644
        %s646 = sand.u32 %s246, 1
        %s647 = smul.addr %s646, 128
        %s648 = scalar_lea.vmem [#allocation8], %s647
        %p649 = pneg %p259
        %p650 = pneg %p256
        %p651 = scmp.lt.s32.totalorder %s40, 1
        %s652 = scalar_select %p651, %s40, 1
        %s653 = scalar_lea.vmem %s9, %s652
        %p654 = pneg %p285
        %p655 = pneg %p282
        %s656 = sand.u32 %s40, 1
        %s657 = scalar_lea.sflag [#allocation9], %s656
        %s658 = sand.u32 %s298, 1
        %s659 = smul.addr %s658, 128
        %s660 = scalar_lea.vmem [#allocation10], %s659
        %p661 = pneg %p311
        %p662 = pneg %p308
        %p663 = scmp.lt.s32.totalorder %s40, 1
        %s664 = scalar_select %p663, %s40, 1
        %s665 = smul.addr %s664, 2
        %s666 = scalar_lea.vmem %s11, %s665
        %p667 = pneg %p337
        %p668 = pneg %p334
        %p669 = pneg %p363
        %p670 = pneg %p360
        %s671 = sand.u32 %s350, 1
        %s672 = scalar_lea.sflag [#allocation4], %s671
        %s673 = sand.u32 %s350, 1
        %s674 = smul.addr %s673, 4
        %s675 = scalar_lea.vmem [#allocation11], %s674
        %p676 = pneg %p389
        %p677 = pneg %p386
        %s678 = sand.u32 %s376, 1
        %s679 = scalar_lea.sflag [#allocation13], %s678
        %s680 = sand.u32 %s376, 1
        %s681 = smul.addr %s680, 4
        %s682 = scalar_lea.vmem [#allocation12], %s681
        %p683 = scmp.lt.s32.totalorder %s40, 1
        %s684 = scalar_select %p683, %s40, 1
        %s685 = smul.addr %s684, 2
        %s686 = scalar_lea.vmem %s2, %s685
        %p687 = scmp.lt.s32.totalorder %s40, 1
        %s688 = scalar_select %p687, %s40, 1
        %s689 = smul.addr %s688, 2
        %s690 = smul.addr %s689, 2
        %s691 = scalar_lea.vmem %s3, %s690
        %p692 = scmp.lt.s32.totalorder %s40, 1
        %s693 = scalar_select %p692, %s40, 1
        %s694 = smul.addr %s693, 2
        %s695 = scalar_lea.vmem %s7, %s694
        %p696 = scmp.lt.s32.totalorder %s40, 1
        %s697 = scalar_select %p696, %s40, 1
        %s698 = scalar_lea.vmem %s9, %s697
        %p699 = scmp.lt.s32.totalorder %s40, 1
        %s700 = scalar_select %p699, %s40, 1
        %s701 = smul.addr %s700, 2
        %s702 = scalar_lea.vmem %s11, %s701
        %v704 = vld [vmem:[%s0] sm:$0xf]
        %v705 = vld [vmem:[%s1] sm:$0xf]
        %v706 = vmul.f32 %v704, %v704
        %v709 = vunpack.c.l.s4 1983009808
        %v710 = vunpack.c.0.s8 %v709
        %v711 = vlaneseq
        %v712 = vshrl.u32 %v711, 7
        %v713 = vsub.s32 %v710, %v712
        %v714 = vrot.slane %v706, %v713
        %v715 = vcombine.high %v714, %v714
        %vm718 = vcmask 1041408
        %v719 = vsel %vm718, %v714, 0.0
        %v720 = vsel %vm718, %v715, 0.0
        %v721 = vadd.f32 %v719, %v720
        %722 = vadd.xlane.f32.xlu0 %v721
        %v723 = vpop.xlane.xlu0 %722
        %v724 = vrcp.pop 256.0
        %v725 = vmul.f32 %v723, %v724
        %v726 = vmul.f32 %v705, %v705
        %v729 = vunpack.c.l.s4 1983009808
        %v730 = vunpack.c.0.s8 %v729
        %v731 = vlaneseq
        %v732 = vshrl.u32 %v731, 7
        %v733 = vsub.s32 %v730, %v732
        %v734 = vrot.slane %v726, %v733
        %v735 = vcombine.high %v734, %v734
        %v738 = vsel %vm718, %v734, 0.0
        %v739 = vsel %vm718, %v735, 0.0
        %v740 = vadd.f32 %v738, %v739
        %741 = vadd.xlane.f32.xlu0 %v740
        %v742 = vpop.xlane.xlu0 %741
        %v743 = vmul.f32 %v742, %v724
        %v744 = vadd.f32 %v725, 1e-12
        %v745 = vrsqrt.pop %v744
        %v748 = vunpack.c.l.s4 269488144
        %v749 = vunpack.c.0.s8 %v748
        %v750 = vlaneseq
        %v751 = vshrl.u32 %v750, 7
        %v752 = vsub.s32 %v749, %v751
        %v753 = vrot.slane %v745, %v752
        %v755 = vmul.f32 %v704, %v753
        %v756 = vadd.f32 %v743, 1e-12
        %v757 = vrsqrt.pop %v756
        %v760 = vunpack.c.l.s4 269488144
        %v761 = vunpack.c.0.s8 %v760
        %v762 = vlaneseq
        %v763 = vshrl.u32 %v762, 7
        %v764 = vsub.s32 %v761, %v763
        %v765 = vrot.slane %v757, %v764
        %v767 = vmul.f32 %v705, %v765
        %v768 = vmul.f32 %v755, 0.70710677
        %v769 = vmul.f32 %v767, 0.70710677
        %v770 = vadd.f32 %v768, %v769
        %v771 = vld [vmem:[%s686] sm:$0x3]
        %773 = vset.pattern.permute.xlu0 0
        %774 = vperm.xlu0 %773, %v771
        %v775 = vpop.permute.xlu0 %774
        %v779 = vunpack.c.l.s4 1983009808
        %v780 = vunpack.c.0.s8 %v779
        %v781 = vlaneseq
        %v782 = vshrl.u32 %v781, 7
        %v783 = vsub.s32 %v780, %v782
        %v784 = vrot.slane %v770, %v783
        %v785 = vcombine.high %v784, %v784
        %v788 = vmul.f32 %v775, %v784
        %v789 = vmul.f32 %v775, %v785
        %v790 = vld [vmem:[%s691] sm:$0xf]
        %v793 = vunpack.c.l.s4 1983009808
        %v794 = vunpack.c.0.s8 %v793
        %v795 = vlaneseq
        %v796 = vshrl.u32 %v795, 7
        %v797 = vsub.s32 %v794, %v796
        %v798 = vrot.slane %v790, %v797
        %v799 = vcombine.high %v798, %v798
        %v802 = vadd.f32 %v788, %v798
        %v803 = vadd.f32 %v789, %v799
        %v804 = vpack.c.bf16 %v802, %v802
        %v805 = vpack.c.bf16 %v803, %v803
        %v806 = vld [vmem:[%s561] sm:$0xf]
        %v807 = vld [vmem:[%s561 + $0x4] sm:$0xf]
        %v808 = vld [vmem:[%s561 + $0x8] sm:$0xf]
        %v809 = vld [vmem:[%s561 + $0xc] sm:$0xf]
        %v810 = vld [vmem:[%s561 + $0x10] sm:$0xf]
        %v811 = vld [vmem:[%s561 + $0x14] sm:$0xf]
        %v812 = vld [vmem:[%s561 + $0x18] sm:$0xf]
        %v813 = vld [vmem:[%s561 + $0x1c] sm:$0xf]
        %v814 = vld [vmem:[%s561 + $0x20] sm:$0xf]
        %v815 = vld [vmem:[%s561 + $0x24] sm:$0xf]
        %v816 = vld [vmem:[%s561 + $0x28] sm:$0xf]
        %v817 = vld [vmem:[%s561 + $0x2c] sm:$0xf]
        %v818 = vld [vmem:[%s561 + $0x30] sm:$0xf]
        %v819 = vld [vmem:[%s561 + $0x34] sm:$0xf]
        %v820 = vld [vmem:[%s561 + $0x38] sm:$0xf]
        %v821 = vld [vmem:[%s561 + $0x3c] sm:$0xf]
        %v822 = vld [vmem:[%s561 + $0x40] sm:$0xf]
        %v823 = vld [vmem:[%s561 + $0x44] sm:$0xf]
        %v824 = vld [vmem:[%s561 + $0x48] sm:$0xf]
        %v825 = vld [vmem:[%s561 + $0x4c] sm:$0xf]
        %v826 = vld [vmem:[%s561 + $0x50] sm:$0xf]
        %v827 = vld [vmem:[%s561 + $0x54] sm:$0xf]
        %v828 = vld [vmem:[%s561 + $0x58] sm:$0xf]
        %v829 = vld [vmem:[%s561 + $0x5c] sm:$0xf]
        %v830 = vld [vmem:[%s561 + $0x60] sm:$0xf]
        %v831 = vld [vmem:[%s561 + $0x64] sm:$0xf]
        %v832 = vld [vmem:[%s561 + $0x68] sm:$0xf]
        %v833 = vld [vmem:[%s561 + $0x6c] sm:$0xf]
        %v834 = vld [vmem:[%s561 + $0x70] sm:$0xf]
        %v835 = vld [vmem:[%s561 + $0x74] sm:$0xf]
        %v836 = vld [vmem:[%s561 + $0x78] sm:$0xf]
        %v837 = vld [vmem:[%s561 + $0x7c] sm:$0xf]
        %v838 = vld [vmem:[%s569] sm:$0x1]
        %v840 = vlaneseq
        %v841 = vshrl.u32 %v840, 7
        %v842 = vsub.s32 0, %v841
        %v843 = vrot.slane %v838, %v842
        %v877 = vunpack.c.l.b16 %v806
        %v878 = vunpack.c.l.b16 %v807
        %v879 = vunpack.c.l.b16 %v808
        %v880 = vunpack.c.l.b16 %v809
        %v881 = vunpack.c.l.b16 %v810
        %v882 = vunpack.c.l.b16 %v811
        %v883 = vunpack.c.l.b16 %v812
        %v884 = vunpack.c.l.b16 %v813
        %v885 = vunpack.c.l.b16 %v814
        %v886 = vunpack.c.l.b16 %v815
        %v887 = vunpack.c.l.b16 %v816
        %v888 = vunpack.c.l.b16 %v817
        %v889 = vunpack.c.l.b16 %v818
        %v890 = vunpack.c.l.b16 %v819
        %v891 = vunpack.c.l.b16 %v820
        %v892 = vunpack.c.l.b16 %v821
        %v893 = vunpack.c.l.b16 %v822
        %v894 = vunpack.c.l.b16 %v823
        %v895 = vunpack.c.l.b16 %v824
        %v896 = vunpack.c.l.b16 %v825
        %v897 = vunpack.c.l.b16 %v826
        %v898 = vunpack.c.l.b16 %v827
        %v899 = vunpack.c.l.b16 %v828
        %v900 = vunpack.c.l.b16 %v829
        %v901 = vunpack.c.l.b16 %v830
        %v902 = vunpack.c.l.b16 %v831
        %v903 = vunpack.c.l.b16 %v832
        %v904 = vunpack.c.l.b16 %v833
        %v905 = vunpack.c.l.b16 %v834
        %v906 = vunpack.c.l.b16 %v835
        %v907 = vunpack.c.l.b16 %v836
        %v908 = vunpack.c.l.b16 %v837
        %v909 = vpack.c.b16 %v878, %v877
        %v910 = vpack.c.b16 %v880, %v879
        %v911 = vpack.c.b16 %v882, %v881
        %v912 = vpack.c.b16 %v884, %v883
        %v913 = vpack.c.b16 %v886, %v885
        %v914 = vpack.c.b16 %v888, %v887
        %v915 = vpack.c.b16 %v890, %v889
        %v916 = vpack.c.b16 %v892, %v891
        %v917 = vpack.c.b16 %v894, %v893
        %v918 = vpack.c.b16 %v896, %v895
        %v919 = vpack.c.b16 %v898, %v897
        %v920 = vpack.c.b16 %v900, %v899
        %v921 = vpack.c.b16 %v902, %v901
        %v922 = vpack.c.b16 %v904, %v903
        %v923 = vpack.c.b16 %v906, %v905
        %v924 = vpack.c.b16 %v908, %v907
        %941 = vmatprep.subr.bf16.mxu0 0
        %942 = vmatpush1.bf16.msra.mxu0 %v909
        %943 = vmatprep.subr.bf16.mxu0 0
        %944 = vmatpush1.bf16.msra.mxu0 %v910
        %945 = vmatprep.subr.bf16.mxu0 0
        %946 = vmatpush1.bf16.msra.mxu0 %v911
        %947 = vmatprep.subr.bf16.mxu0 0
        %948 = vmatpush1.bf16.msra.mxu0 %v912
        %949 = vmatprep.subr.bf16.mxu0 0
        %950 = vmatpush1.bf16.msra.mxu0 %v913
        %951 = vmatprep.subr.bf16.mxu0 0
        %952 = vmatpush1.bf16.msra.mxu0 %v914
        %953 = vmatprep.subr.bf16.mxu0 0
        %954 = vmatpush1.bf16.msra.mxu0 %v915
        %955 = vmatprep.subr.bf16.mxu0 0
        %956 = vmatpush1.bf16.msra.mxu0 %v916
        %957 = vmatprep.subr.bf16.mxu0 0
        %958 = vmatpush1.bf16.msra.mxu0 %v917
        %959 = vmatprep.subr.bf16.mxu0 0
        %960 = vmatpush1.bf16.msra.mxu0 %v918
        %961 = vmatprep.subr.bf16.mxu0 0
        %962 = vmatpush1.bf16.msra.mxu0 %v919
        %963 = vmatprep.subr.bf16.mxu0 0
        %964 = vmatpush1.bf16.msra.mxu0 %v920
        %965 = vmatprep.subr.bf16.mxu0 0
        %966 = vmatpush1.bf16.msra.mxu0 %v921
        %967 = vmatprep.subr.bf16.mxu0 0
        %968 = vmatpush1.bf16.msra.mxu0 %v922
        %969 = vmatprep.subr.bf16.mxu0 0
        %970 = vmatpush1.bf16.msra.mxu0 %v923
        %971 = vmatprep.subr.bf16.mxu0 0
        %972 = vmatpush1.bf16.msra.mxu0 %v924
        %973 = vmatprep.mubr.bf16.mxu0 %v805
        %974 = vmatmul.mubr.bf16.gmra.mrb[0].mxu0 %v804
        %v975 = vpop.f32.mrb[0].mxu0
        %v976 = vadd.f32 %v843, %v975
        %v977 = vpop.f32.mrb[0].mxu0
        %v978 = vpop.f32.mrb[0].mxu0
        %v979 = vpop.f32.mrb[0].mxu0
        %980 = vdwg.mxu0
        %v981 = vmax.f32 %v976, 0.0
        %v982 = vpack.c.bf16 %v981, %v981
        %v983 = vld [vmem:[%s578] sm:$0xff]
        %v984 = vld [vmem:[%s578 + $0x8] sm:$0xff]
        %v985 = vld [vmem:[%s578 + $0x10] sm:$0xff]
        %v986 = vld [vmem:[%s578 + $0x18] sm:$0xff]
        %v987 = vld [vmem:[%s578 + $0x20] sm:$0xff]
        %v988 = vld [vmem:[%s578 + $0x28] sm:$0xff]
        %v989 = vld [vmem:[%s578 + $0x30] sm:$0xff]
        %v990 = vld [vmem:[%s578 + $0x38] sm:$0xff]
        %v991 = vld [vmem:[%s578 + $0x40] sm:$0xff]
        %v992 = vld [vmem:[%s578 + $0x48] sm:$0xff]
        %v993 = vld [vmem:[%s578 + $0x50] sm:$0xff]
        %v994 = vld [vmem:[%s578 + $0x58] sm:$0xff]
        %v995 = vld [vmem:[%s578 + $0x60] sm:$0xff]
        %v996 = vld [vmem:[%s578 + $0x68] sm:$0xff]
        %v997 = vld [vmem:[%s578 + $0x70] sm:$0xff]
        %v998 = vld [vmem:[%s578 + $0x78] sm:$0xff]
        %v999 = vld [vmem:[%s695] sm:$0x3]
        %v1001 = vlaneseq
        %v1002 = vshrl.u32 %v1001, 7
        %v1003 = vsub.s32 0, %v1002
        %v1004 = vrot.slane %v999, %v1003
        %v1005 = vlaneseq
        %v1006 = vshrl.u32 %v1005, 7
        %v1007 = vsub.s32 1, %v1006
        %v1008 = vrot.slane %v999, %v1007
        %v1027 = vunpack.c.l.b16 %v983
        %v1028 = vunpack.c.h.b16 %v983
        %v1029 = vunpack.c.l.b16 %v984
        %v1030 = vunpack.c.h.b16 %v984
        %v1031 = vunpack.c.l.b16 %v985
        %v1032 = vunpack.c.h.b16 %v985
        %v1033 = vunpack.c.l.b16 %v986
        %v1034 = vunpack.c.h.b16 %v986
        %v1035 = vunpack.c.l.b16 %v987
        %v1036 = vunpack.c.h.b16 %v987
        %v1037 = vunpack.c.l.b16 %v988
        %v1038 = vunpack.c.h.b16 %v988
        %v1039 = vunpack.c.l.b16 %v989
        %v1040 = vunpack.c.h.b16 %v989
        %v1041 = vunpack.c.l.b16 %v990
        %v1042 = vunpack.c.h.b16 %v990
        %v1043 = vunpack.c.l.b16 %v991
        %v1044 = vunpack.c.h.b16 %v991
        %v1045 = vunpack.c.l.b16 %v992
        %v1046 = vunpack.c.h.b16 %v992
        %v1047 = vunpack.c.l.b16 %v993
        %v1048 = vunpack.c.h.b16 %v993
        %v1049 = vunpack.c.l.b16 %v994
        %v1050 = vunpack.c.h.b16 %v994
        %v1051 = vunpack.c.l.b16 %v995
        %v1052 = vunpack.c.h.b16 %v995
        %v1053 = vunpack.c.l.b16 %v996
        %v1054 = vunpack.c.h.b16 %v996
        %v1055 = vunpack.c.l.b16 %v997
        %v1056 = vunpack.c.h.b16 %v997
        %v1057 = vunpack.c.l.b16 %v998
        %v1058 = vunpack.c.h.b16 %v998
        %v1059 = vpack.c.b16 %v1029, %v1027
        %v1060 = vpack.c.b16 %v1030, %v1028
        %v1061 = vpack.c.b16 %v1033, %v1031
        %v1062 = vpack.c.b16 %v1034, %v1032
        %v1063 = vpack.c.b16 %v1037, %v1035
        %v1064 = vpack.c.b16 %v1038, %v1036
        %v1065 = vpack.c.b16 %v1041, %v1039
        %v1066 = vpack.c.b16 %v1042, %v1040
        %v1067 = vpack.c.b16 %v1045, %v1043
        %v1068 = vpack.c.b16 %v1046, %v1044
        %v1069 = vpack.c.b16 %v1049, %v1047
        %v1070 = vpack.c.b16 %v1050, %v1048
        %v1071 = vpack.c.b16 %v1053, %v1051
        %v1072 = vpack.c.b16 %v1054, %v1052
        %v1073 = vpack.c.b16 %v1057, %v1055
        %v1074 = vpack.c.b16 %v1058, %v1056
        %1091 = vmatprep.subr.bf16.mxu0 %v1060
        %1092 = vmatpush1.bf16.msra.mxu0 %v1059
        %1093 = vmatprep.subr.bf16.mxu0 %v1062
        %1094 = vmatpush1.bf16.msra.mxu0 %v1061
        %1095 = vmatprep.subr.bf16.mxu0 %v1064
        %1096 = vmatpush1.bf16.msra.mxu0 %v1063
        %1097 = vmatprep.subr.bf16.mxu0 %v1066
        %1098 = vmatpush1.bf16.msra.mxu0 %v1065
        %1099 = vmatprep.subr.bf16.mxu0 %v1068
        %1100 = vmatpush1.bf16.msra.mxu0 %v1067
        %1101 = vmatprep.subr.bf16.mxu0 %v1070
        %1102 = vmatpush1.bf16.msra.mxu0 %v1069
        %1103 = vmatprep.subr.bf16.mxu0 %v1072
        %1104 = vmatpush1.bf16.msra.mxu0 %v1071
        %1105 = vmatprep.subr.bf16.mxu0 %v1074
        %1106 = vmatpush1.bf16.msra.mxu0 %v1073
        %1107 = vmatprep.subr.bf16.mxu0 0
        %1108 = vmatpush1.bf16.msra.mxu0 0
        %1109 = vmatprep.subr.bf16.mxu0 0
        %1110 = vmatpush1.bf16.msra.mxu0 0
        %1111 = vmatprep.subr.bf16.mxu0 0
        %1112 = vmatpush1.bf16.msra.mxu0 0
        %1113 = vmatprep.subr.bf16.mxu0 0
        %1114 = vmatpush1.bf16.msra.mxu0 0
        %1115 = vmatprep.subr.bf16.mxu0 0
        %1116 = vmatpush1.bf16.msra.mxu0 0
        %1117 = vmatprep.subr.bf16.mxu0 0
        %1118 = vmatpush1.bf16.msra.mxu0 0
        %1119 = vmatprep.subr.bf16.mxu0 0
        %1120 = vmatpush1.bf16.msra.mxu0 0
        %1121 = vmatprep.subr.bf16.mxu0 0
        %1122 = vmatpush1.bf16.msra.mxu0 0
        %1123 = vmatprep.mubr.bf16.mxu0 0
        %1124 = vmatmul.mubr.bf16.gmra.mrb[0].mxu0 %v982
        %v1125 = vpop.f32.mrb[0].mxu0
        %v1126 = vadd.f32 %v1004, %v1125
        %v1127 = vpop.f32.mrb[0].mxu0
        %v1128 = vadd.f32 %v1008, %v1127
        %v1129 = vpop.f32.mrb[0].mxu0
        %v1130 = vpop.f32.mrb[0].mxu0
        %1131 = vdwg.mxu0
        %v1134 = vcombine.low %v1126, %v1128
        %v1136 = vunpack.c.l.s4 1983009808
        %v1137 = vunpack.c.0.s8 %v1136
        %v1138 = vlaneseq
        %v1139 = vshrl.u32 %v1138, 7
        %v1140 = vsub.s32 %v1137, %v1139
        %v1141 = vrot.slane %v1134, %v1140
        %1143 = vst [vmem:[%s682] sm:$0xf] %v1141
        %v1144 = vpack.c.bf16 %v1126, %v1126
        %v1145 = vpack.c.bf16 %v1128, %v1128
        %v1146 = vld [vmem:[%s587] sm:$0xf]
        %v1147 = vld [vmem:[%s587 + $0x4] sm:$0xf]
        %v1148 = vld [vmem:[%s587 + $0x8] sm:$0xf]
        %v1149 = vld [vmem:[%s587 + $0xc] sm:$0xf]
        %v1150 = vld [vmem:[%s587 + $0x10] sm:$0xf]
        %v1151 = vld [vmem:[%s587 + $0x14] sm:$0xf]
        %v1152 = vld [vmem:[%s587 + $0x18] sm:$0xf]
        %v1153 = vld [vmem:[%s587 + $0x1c] sm:$0xf]
        %v1154 = vld [vmem:[%s587 + $0x20] sm:$0xf]
        %v1155 = vld [vmem:[%s587 + $0x24] sm:$0xf]
        %v1156 = vld [vmem:[%s587 + $0x28] sm:$0xf]
        %v1157 = vld [vmem:[%s587 + $0x2c] sm:$0xf]
        %v1158 = vld [vmem:[%s587 + $0x30] sm:$0xf]
        %v1159 = vld [vmem:[%s587 + $0x34] sm:$0xf]
        %v1160 = vld [vmem:[%s587 + $0x38] sm:$0xf]
        %v1161 = vld [vmem:[%s587 + $0x3c] sm:$0xf]
        %v1162 = vld [vmem:[%s587 + $0x40] sm:$0xf]
        %v1163 = vld [vmem:[%s587 + $0x44] sm:$0xf]
        %v1164 = vld [vmem:[%s587 + $0x48] sm:$0xf]
        %v1165 = vld [vmem:[%s587 + $0x4c] sm:$0xf]
        %v1166 = vld [vmem:[%s587 + $0x50] sm:$0xf]
        %v1167 = vld [vmem:[%s587 + $0x54] sm:$0xf]
        %v1168 = vld [vmem:[%s587 + $0x58] sm:$0xf]
        %v1169 = vld [vmem:[%s587 + $0x5c] sm:$0xf]
        %v1170 = vld [vmem:[%s587 + $0x60] sm:$0xf]
        %v1171 = vld [vmem:[%s587 + $0x64] sm:$0xf]
        %v1172 = vld [vmem:[%s587 + $0x68] sm:$0xf]
        %v1173 = vld [vmem:[%s587 + $0x6c] sm:$0xf]
        %v1174 = vld [vmem:[%s587 + $0x70] sm:$0xf]
        %v1175 = vld [vmem:[%s587 + $0x74] sm:$0xf]
        %v1176 = vld [vmem:[%s587 + $0x78] sm:$0xf]
        %v1177 = vld [vmem:[%s587 + $0x7c] sm:$0xf]
        %v1178 = vld [vmem:[%s698] sm:$0x1]
        %v1180 = vlaneseq
        %v1181 = vshrl.u32 %v1180, 7
        %v1182 = vsub.s32 0, %v1181
        %v1183 = vrot.slane %v1178, %v1182
        %v1217 = vunpack.c.l.b16 %v1146
        %v1218 = vunpack.c.l.b16 %v1147
        %v1219 = vunpack.c.l.b16 %v1148
        %v1220 = vunpack.c.l.b16 %v1149
        %v1221 = vunpack.c.l.b16 %v1150
        %v1222 = vunpack.c.l.b16 %v1151
        %v1223 = vunpack.c.l.b16 %v1152
        %v1224 = vunpack.c.l.b16 %v1153
        %v1225 = vunpack.c.l.b16 %v1154
        %v1226 = vunpack.c.l.b16 %v1155
        %v1227 = vunpack.c.l.b16 %v1156
        %v1228 = vunpack.c.l.b16 %v1157
        %v1229 = vunpack.c.l.b16 %v1158
        %v1230 = vunpack.c.l.b16 %v1159
        %v1231 = vunpack.c.l.b16 %v1160
        %v1232 = vunpack.c.l.b16 %v1161
        %v1233 = vunpack.c.l.b16 %v1162
        %v1234 = vunpack.c.l.b16 %v1163
        %v1235 = vunpack.c.l.b16 %v1164
        %v1236 = vunpack.c.l.b16 %v1165
        %v1237 = vunpack.c.l.b16 %v1166
        %v1238 = vunpack.c.l.b16 %v1167
        %v1239 = vunpack.c.l.b16 %v1168
        %v1240 = vunpack.c.l.b16 %v1169
        %v1241 = vunpack.c.l.b16 %v1170
        %v1242 = vunpack.c.l.b16 %v1171
        %v1243 = vunpack.c.l.b16 %v1172
        %v1244 = vunpack.c.l.b16 %v1173
        %v1245 = vunpack.c.l.b16 %v1174
        %v1246 = vunpack.c.l.b16 %v1175
        %v1247 = vunpack.c.l.b16 %v1176
        %v1248 = vunpack.c.l.b16 %v1177
        %v1249 = vpack.c.b16 %v1218, %v1217
        %v1250 = vpack.c.b16 %v1220, %v1219
        %v1251 = vpack.c.b16 %v1222, %v1221
        %v1252 = vpack.c.b16 %v1224, %v1223
        %v1253 = vpack.c.b16 %v1226, %v1225
        %v1254 = vpack.c.b16 %v1228, %v1227
        %v1255 = vpack.c.b16 %v1230, %v1229
        %v1256 = vpack.c.b16 %v1232, %v1231
        %v1257 = vpack.c.b16 %v1234, %v1233
        %v1258 = vpack.c.b16 %v1236, %v1235
        %v1259 = vpack.c.b16 %v1238, %v1237
        %v1260 = vpack.c.b16 %v1240, %v1239
        %v1261 = vpack.c.b16 %v1242, %v1241
        %v1262 = vpack.c.b16 %v1244, %v1243
        %v1263 = vpack.c.b16 %v1246, %v1245
        %v1264 = vpack.c.b16 %v1248, %v1247
        %1281 = vmatprep.subr.bf16.mxu0 0
        %1282 = vmatpush1.bf16.msra.mxu0 %v1249
        %1283 = vmatprep.subr.bf16.mxu0 0
        %1284 = vmatpush1.bf16.msra.mxu0 %v1250
        %1285 = vmatprep.subr.bf16.mxu0 0
        %1286 = vmatpush1.bf16.msra.mxu0 %v1251
        %1287 = vmatprep.subr.bf16.mxu0 0
        %1288 = vmatpush1.bf16.msra.mxu0 %v1252
        %1289 = vmatprep.subr.bf16.mxu0 0
        %1290 = vmatpush1.bf16.msra.mxu0 %v1253
        %1291 = vmatprep.subr.bf16.mxu0 0
        %1292 = vmatpush1.bf16.msra.mxu0 %v1254
        %1293 = vmatprep.subr.bf16.mxu0 0
        %1294 = vmatpush1.bf16.msra.mxu0 %v1255
        %1295 = vmatprep.subr.bf16.mxu0 0
        %1296 = vmatpush1.bf16.msra.mxu0 %v1256
        %1297 = vmatprep.subr.bf16.mxu0 0
        %1298 = vmatpush1.bf16.msra.mxu0 %v1257
        %1299 = vmatprep.subr.bf16.mxu0 0
        %1300 = vmatpush1.bf16.msra.mxu0 %v1258
        %1301 = vmatprep.subr.bf16.mxu0 0
        %1302 = vmatpush1.bf16.msra.mxu0 %v1259
        %1303 = vmatprep.subr.bf16.mxu0 0
        %1304 = vmatpush1.bf16.msra.mxu0 %v1260
        %1305 = vmatprep.subr.bf16.mxu0 0
        %1306 = vmatpush1.bf16.msra.mxu0 %v1261
        %1307 = vmatprep.subr.bf16.mxu0 0
        %1308 = vmatpush1.bf16.msra.mxu0 %v1262
        %1309 = vmatprep.subr.bf16.mxu0 0
        %1310 = vmatpush1.bf16.msra.mxu0 %v1263
        %1311 = vmatprep.subr.bf16.mxu0 0
        %1312 = vmatpush1.bf16.msra.mxu0 %v1264
        %1313 = vmatprep.mubr.bf16.mxu0 %v1145
        %1314 = vmatmul.mubr.bf16.gmra.mrb[0].mxu0 %v1144
        %v1315 = vpop.f32.mrb[0].mxu0
        %v1316 = vadd.f32 %v1183, %v1315
        %v1317 = vpop.f32.mrb[0].mxu0
        %v1318 = vpop.f32.mrb[0].mxu0
        %v1319 = vpop.f32.mrb[0].mxu0
        %1320 = vdwg.mxu0
        %v1321 = vmax.f32 %v1316, 0.0
        %v1322 = vpack.c.bf16 %v1321, %v1321
        %v1323 = vld [vmem:[%s596] sm:$0xff]
        %v1324 = vld [vmem:[%s596 + $0x8] sm:$0xff]
        %v1325 = vld [vmem:[%s596 + $0x10] sm:$0xff]
        %v1326 = vld [vmem:[%s596 + $0x18] sm:$0xff]
        %v1327 = vld [vmem:[%s596 + $0x20] sm:$0xff]
        %v1328 = vld [vmem:[%s596 + $0x28] sm:$0xff]
        %v1329 = vld [vmem:[%s596 + $0x30] sm:$0xff]
        %v1330 = vld [vmem:[%s596 + $0x38] sm:$0xff]
        %v1331 = vld [vmem:[%s596 + $0x40] sm:$0xff]
        %v1332 = vld [vmem:[%s596 + $0x48] sm:$0xff]
        %v1333 = vld [vmem:[%s596 + $0x50] sm:$0xff]
        %v1334 = vld [vmem:[%s596 + $0x58] sm:$0xff]
        %v1335 = vld [vmem:[%s596 + $0x60] sm:$0xff]
        %v1336 = vld [vmem:[%s596 + $0x68] sm:$0xff]
        %v1337 = vld [vmem:[%s596 + $0x70] sm:$0xff]
        %v1338 = vld [vmem:[%s596 + $0x78] sm:$0xff]
        %v1339 = vld [vmem:[%s702] sm:$0x3]
        %v1341 = vlaneseq
        %v1342 = vshrl.u32 %v1341, 7
        %v1343 = vsub.s32 0, %v1342
        %v1344 = vrot.slane %v1339, %v1343
        %v1345 = vlaneseq
        %v1346 = vshrl.u32 %v1345, 7
        %v1347 = vsub.s32 1, %v1346
        %v1348 = vrot.slane %v1339, %v1347
        %v1367 = vunpack.c.l.b16 %v1323
        %v1368 = vunpack.c.h.b16 %v1323
        %v1369 = vunpack.c.l.b16 %v1324
        %v1370 = vunpack.c.h.b16 %v1324
        %v1371 = vunpack.c.l.b16 %v1325
        %v1372 = vunpack.c.h.b16 %v1325
        %v1373 = vunpack.c.l.b16 %v1326
        %v1374 = vunpack.c.h.b16 %v1326
        %v1375 = vunpack.c.l.b16 %v1327
        %v1376 = vunpack.c.h.b16 %v1327
        %v1377 = vunpack.c.l.b16 %v1328
        %v1378 = vunpack.c.h.b16 %v1328
        %v1379 = vunpack.c.l.b16 %v1329
        %v1380 = vunpack.c.h.b16 %v1329
        %v1381 = vunpack.c.l.b16 %v1330
        %v1382 = vunpack.c.h.b16 %v1330
        %v1383 = vunpack.c.l.b16 %v1331
        %v1384 = vunpack.c.h.b16 %v1331
        %v1385 = vunpack.c.l.b16 %v1332
        %v1386 = vunpack.c.h.b16 %v1332
        %v1387 = vunpack.c.l.b16 %v1333
        %v1388 = vunpack.c.h.b16 %v1333
        %v1389 = vunpack.c.l.b16 %v1334
        %v1390 = vunpack.c.h.b16 %v1334
        %v1391 = vunpack.c.l.b16 %v1335
        %v1392 = vunpack.c.h.b16 %v1335
        %v1393 = vunpack.c.l.b16 %v1336
        %v1394 = vunpack.c.h.b16 %v1336
        %v1395 = vunpack.c.l.b16 %v1337
        %v1396 = vunpack.c.h.b16 %v1337
        %v1397 = vunpack.c.l.b16 %v1338
        %v1398 = vunpack.c.h.b16 %v1338
        %v1399 = vpack.c.b16 %v1369, %v1367
        %v1400 = vpack.c.b16 %v1370, %v1368
        %v1401 = vpack.c.b16 %v1373, %v1371
        %v1402 = vpack.c.b16 %v1374, %v1372
        %v1403 = vpack.c.b16 %v1377, %v1375
        %v1404 = vpack.c.b16 %v1378, %v1376
        %v1405 = vpack.c.b16 %v1381, %v1379
        %v1406 = vpack.c.b16 %v1382, %v1380
        %v1407 = vpack.c.b16 %v1385, %v1383
        %v1408 = vpack.c.b16 %v1386, %v1384
        %v1409 = vpack.c.b16 %v1389, %v1387
        %v1410 = vpack.c.b16 %v1390, %v1388
        %v1411 = vpack.c.b16 %v1393, %v1391
        %v1412 = vpack.c.b16 %v1394, %v1392
        %v1413 = vpack.c.b16 %v1397, %v1395
        %v1414 = vpack.c.b16 %v1398, %v1396
        %1431 = vmatprep.subr.bf16.mxu0 %v1400
        %1432 = vmatpush1.bf16.msra.mxu0 %v1399
        %1433 = vmatprep.subr.bf16.mxu0 %v1402
        %1434 = vmatpush1.bf16.msra.mxu0 %v1401
        %1435 = vmatprep.subr.bf16.mxu0 %v1404
        %1436 = vmatpush1.bf16.msra.mxu0 %v1403
        %1437 = vmatprep.subr.bf16.mxu0 %v1406
        %1438 = vmatpush1.bf16.msra.mxu0 %v1405
        %1439 = vmatprep.subr.bf16.mxu0 %v1408
        %1440 = vmatpush1.bf16.msra.mxu0 %v1407
        %1441 = vmatprep.subr.bf16.mxu0 %v1410
        %1442 = vmatpush1.bf16.msra.mxu0 %v1409
        %1443 = vmatprep.subr.bf16.mxu0 %v1412
        %1444 = vmatpush1.bf16.msra.mxu0 %v1411
        %1445 = vmatprep.subr.bf16.mxu0 %v1414
        %1446 = vmatpush1.bf16.msra.mxu0 %v1413
        %1447 = vmatprep.subr.bf16.mxu0 0
        %1448 = vmatpush1.bf16.msra.mxu0 0
        %1449 = vmatprep.subr.bf16.mxu0 0
        %1450 = vmatpush1.bf16.msra.mxu0 0
        %1451 = vmatprep.subr.bf16.mxu0 0
        %1452 = vmatpush1.bf16.msra.mxu0 0
        %1453 = vmatprep.subr.bf16.mxu0 0
        %1454 = vmatpush1.bf16.msra.mxu0 0
        %1455 = vmatprep.subr.bf16.mxu0 0
        %1456 = vmatpush1.bf16.msra.mxu0 0
        %1457 = vmatprep.subr.bf16.mxu0 0
        %1458 = vmatpush1.bf16.msra.mxu0 0
        %1459 = vmatprep.subr.bf16.mxu0 0
        %1460 = vmatpush1.bf16.msra.mxu0 0
        %1461 = vmatprep.subr.bf16.mxu0 0
        %1462 = vmatpush1.bf16.msra.mxu0 0
        %1463 = vmatprep.mubr.bf16.mxu0 0
        %1464 = vmatmul.mubr.bf16.gmra.mrb[0].mxu0 %v1322
        %v1465 = vpop.f32.mrb[0].mxu0
        %v1466 = vadd.f32 %v1344, %v1465
        %v1467 = vpop.f32.mrb[0].mxu0
        %v1468 = vadd.f32 %v1348, %v1467
        %v1469 = vpop.f32.mrb[0].mxu0
        %v1470 = vpop.f32.mrb[0].mxu0
        %1471 = vdwg.mxu0
        %v1472 = vxor.u32 %v1466, 2147483648
        %v1473 = vxor.u32 %v1468, 2147483648
        %v1474 = vmul.f32 %v1472, 1.442695
        %v1475 = vpow.pop %v1474
        %v1476 = vmul.f32 %v1473, 1.442695
        %v1477 = vpow.pop %v1476
        %v1478 = vadd.f32 %v1475, 1.0
        %v1479 = vadd.f32 %v1477, 1.0
        %v1480 = vrcp.pop %v1478
        %v1481 = vmul.f32 1.0, %v1480
        %v1482 = vrcp.pop %v1479
        %v1483 = vmul.f32 1.0, %v1482
        %v1486 = vcombine.low %v1481, %v1483
        %v1488 = vunpack.c.l.s4 1983009808
        %v1489 = vunpack.c.0.s8 %v1488
        %v1490 = vlaneseq
        %v1491 = vshrl.u32 %v1490, 7
        %v1492 = vsub.s32 %v1489, %v1491
        %v1493 = vrot.slane %v1486, %v1492
        %1495 = vst [vmem:[%s675] sm:$0xf] %v1493
        %s1496 = sand.u32 %s350, 1
        %s1497 = scalar_lea.sflag [#allocation4], %s1496
        %s1498 = sand.u32 %s350, 1
        %s1499 = smul.addr %s1498, 4
        %s1500 = scalar_lea.vmem [#allocation11], %s1499
        %s1501 = sand.u32 %s376, 1
        %s1502 = scalar_lea.sflag [#allocation13], %s1501
        %s1503 = sand.u32 %s376, 1
        %s1504 = smul.addr %s1503, 4
        %s1505 = scalar_lea.vmem [#allocation12], %s1504
        // Predicated region
        $region89: #{tpu_custom_call.1} parent=67 // pred_check
          %p1506 = pneg %p360
        $region90: #{tpu_custom_call.1} parent=67 // pred_check_branch
          %1508 = sbr.rel (%p1506) target = $region92
        $region91: #{tpu_custom_call.1} parent=67 // pred_region
          %s1510 = ssub.s32 64, 64
          %1511 = vsyncadd %s1497, %s1510
          %s1512 = smul.addr %s40, 2
          %s1513 = smul.addr %s1512, 32
          %s1514 = scalar_lea.hbm %s12, %s1513
          %s1516 = sshll.u32 %s1500, 4
          %s1517 = int_to_ptr.vmem [resolvable:$true] %s1516
          %1519 = dma.vmem_to_hbm [thread:$0]  %s1517, 64, %s1514, %s1497
        $region92: #{tpu_custom_call.1} parent=67 // pred_fallthru
          _
        // Predicated region
        $region93: #{tpu_custom_call.1} parent=67 // pred_check
          %p1520 = pneg %p386
        $region94: #{tpu_custom_call.1} parent=67 // pred_check_branch
          %1522 = sbr.rel (%p1520) target = $region96
        $region95: #{tpu_custom_call.1} parent=67 // pred_region
          %s1524 = ssub.s32 64, 64
          %1525 = vsyncadd %s1502, %s1524
          %s1526 = smul.addr %s40, 2
          %s1527 = smul.addr %s1526, 32
          %s1528 = scalar_lea.hbm %s13, %s1527
          %s1530 = sshll.u32 %s1505, 4
          %s1531 = int_to_ptr.vmem [resolvable:$true] %s1530
          %1533 = dma.vmem_to_hbm [thread:$0]  %s1531, 64, %s1528, %s1502
        $region96: #{tpu_custom_call.1} parent=67 // pred_fallthru
          _
      $region68: #{tpu_custom_call.1} parent=5 // pred_fallthru
        _
      %p1534 = scmp.le.s32.totalorder 2, %s35
      // Predicated region
      $region97: #{tpu_custom_call.1} parent=5 // pred_check
        %p1535 = pneg %p1534
      $region98: #{tpu_custom_call.1} parent=5 // pred_check_branch
        %1537 = sbr.rel (%p1535) target = $region100
      $region99: #{tpu_custom_call.1} parent=5 // pred_region
        %s1538 = ssub.s32 %s35, 2
        // Predicated region
        $region101: #{tpu_custom_call.1} parent=99 // pred_check
          %p1539 = pneg %p366
        $region102: #{tpu_custom_call.1} parent=99 // pred_check_branch
          %1541 = sbr.rel (%p1539) target = $region104
        $region103: #{tpu_custom_call.1} parent=99 // pred_region
          %s1542 = sand.u32 %s351, 1
          %s1543 = scalar_lea.sflag [#allocation4], %s1542
          %s1544 = sand.u32 %s351, 1
          %s1545 = smul.addr %s1544, 4
          %s1546 = scalar_lea.vmem [#allocation11], %s1545
          %1547 = dma.done %s1543, 64
        $region104: #{tpu_custom_call.1} parent=99 // pred_fallthru
          _
        // Predicated region
        $region105: #{tpu_custom_call.1} parent=99 // pred_check
          %p1548 = pneg %p392
        $region106: #{tpu_custom_call.1} parent=99 // pred_check_branch
          %1550 = sbr.rel (%p1548) target = $region108
        $region107: #{tpu_custom_call.1} parent=99 // pred_region
          %s1551 = sand.u32 %s377, 1
          %s1552 = scalar_lea.sflag [#allocation13], %s1551
          %s1553 = sand.u32 %s377, 1
          %s1554 = smul.addr %s1553, 4
          %s1555 = scalar_lea.vmem [#allocation12], %s1554
          %1556 = dma.done %s1552, 64
        $region108: #{tpu_custom_call.1} parent=99 // pred_fallthru
          _
      $region100: #{tpu_custom_call.1} parent=5 // pred_fallthru
        _
    $region6: #{tpu_custom_call.1} parent=1 // loop_footer
      %s39 = sadd.s32 1, %s35
    $region7: #{tpu_custom_call.1} parent=1 // loop_footer_branch
      %34 = sbr.rel target = $region3
    $region8: #{tpu_custom_call.1} parent=1 // loop_exit
      _
    %1557 = vsyncpa [#allocation3], 1
    %s1558 = scalar_lea.sflag [#allocation3], 1
    %1559 = vsyncpa %s1558, 1
    %1560 = vsyncpa [#allocation6], 1
    %s1561 = scalar_lea.sflag [#allocation6], 1
    %1562 = vsyncpa %s1561, 1
    %1563 = vsyncpa [#allocation9], 1
    %s1564 = scalar_lea.sflag [#allocation9], 1
    %1565 = vsyncpa %s1564, 1
    %1566 = vsyncpa [#allocation4], 1
    %s1567 = scalar_lea.sflag [#allocation4], 1
    %1568 = vsyncpa %s1567, 1
    %1569 = vsyncpa [#allocation13], 1
    %s1570 = scalar_lea.sflag [#allocation13], 1
    %1571 = vsyncpa %s1570, 1

</llo_original>
